<compile_context>
chip_gen: v5e
topology: v5e:2x2
jax: 0.10.0
libtpu: 0.0.40
codegen_flags: <defaults>
</compile_context>

<pallas_src>
import functools

import jax
import jax.numpy as jnp
from jax.experimental import pallas as pl
from jax.experimental.pallas import tpu as pltpu


# ----------------------------- Pallas kernels --------------------------------
def _conv_act_kernel(p_ref, w_ref, b_ref, y_ref, sum_ref, sq_ref):
    # p_ref: (K, TILE_M) bf16 patches  |  w_ref: (OC, K) bf16  |  b_ref: (OC,1) f32
    # y_ref: (OC, TILE_M) f32          |  sum_ref/sq_ref: (1, OC, 1) f32 partials
    y = jnp.dot(w_ref[...], p_ref[...], preferred_element_type=jnp.float32)
    y = y + b_ref[...]                                   # conv bias
    y = jnp.where(y > 0, y, jnp.float32(0.2) * y)        # LeakyReLU(0.2)
    y_ref[...] = y
    # Per-tile partial statistics (lane-axis reduction) -> no cross-step carry.
    sum_ref[0] = jnp.sum(y, axis=1, keepdims=True)       # (OC, 1)
    sq_ref[0] = jnp.sum(y * y, axis=1, keepdims=True)    # (OC, 1)


def _bn_apply_kernel(y_ref, ss_ref, o_ref):
    # y_ref: (OC, TILE_M) f32 | ss_ref: (2, OC, 1) f32 packed [scale; shift]
    o_ref[...] = (y_ref[...] * ss_ref[0] + ss_ref[1]).astype(o_ref.dtype)


# ------------------------------ JAX glue --------------------------------------
def _pick_tile_m(m):
    for t in (2048, 1024, 512, 256, 128):
        if m % t == 0:
            return t
    return m


def _im2col_t(x_cf, k=4, s=2, p=1):
    """x_cf: (C, B, H, W) -> bf16 patches (C*k*k, B*OH*OW), transposed layout.
    Feature index = c*k*k + i*k + j, matching PyTorch weight.reshape(OC, -1)."""
    C, B, H, W = x_cf.shape
    xp = jnp.pad(x_cf, ((0, 0), (0, 0), (p, p), (p, p)))
    OH = (H + 2 * p - k) // s + 1
    OW = (W + 2 * p - k) // s + 1
    taps = []
    for i in range(k):
        for j in range(k):
            taps.append(xp[:, :, i:i + s * OH:s, j:j + s * OW:s])  # (C,B,OH,OW)
    pat = jnp.stack(taps, axis=1).reshape(C * k * k, B * OH * OW)
    # TODO(synk): build patches inside the kernel (strided refs / space-to-depth)
    # so the k*k-expanded patch matrix never hits HBM.
    return pat.astype(jnp.bfloat16), OH, OW


def _conv_lrelu_bn_layer(x_cf, w, b, gamma, beta):
    """x_cf: (C, B, H, W) f32 -> (OC, B, OH, OW) f32."""
    C, B, H, W = x_cf.shape
    OC = w.shape[0]
    patches, OH, OW = _im2col_t(x_cf)                 # (K, M) bf16
    K, M = patches.shape
    tile_m = _pick_tile_m(M)
    n_t = M // tile_m

    w_mat = w.reshape(OC, K).astype(jnp.bfloat16)
    bias = b.reshape(OC, 1).astype(jnp.float32)

    cp = pltpu.CompilerParams(
        dimension_semantics=("parallel",),
        vmem_limit_bytes=32 * 1024 * 1024,
    )

    # Pass 1: matmul + bias + LeakyReLU, with per-tile stat partials.
    y, psum, psq = pl.pallas_call(
        _conv_act_kernel,
        out_shape=(jax.ShapeDtypeStruct((OC, M), jnp.float32),
                   jax.ShapeDtypeStruct((n_t, OC, 1), jnp.float32),
                   jax.ShapeDtypeStruct((n_t, OC, 1), jnp.float32)),
        grid=(n_t,),
        in_specs=[pl.BlockSpec((K, tile_m), lambda m: (0, m)),
                  pl.BlockSpec((OC, K), lambda m: (0, 0)),
                  pl.BlockSpec((OC, 1), lambda m: (0, 0))],
        out_specs=(pl.BlockSpec((OC, tile_m), lambda m: (0, m)),
                   pl.BlockSpec((1, OC, 1), lambda m: (m, 0, 0)),
                   pl.BlockSpec((1, OC, 1), lambda m: (m, 0, 0))),
        compiler_params=cp,
    )(patches, w_mat, bias)

    # Finalize global batch statistics (tiny per-channel math, plain JAX).
    mean = psum.sum(axis=0)[:, 0] / M                                  # (OC,)
    var = jnp.maximum(psq.sum(axis=0)[:, 0] / M - mean * mean, 0.0)    # biased
    scale = gamma * jax.lax.rsqrt(var + jnp.float32(1e-5))
    shift = beta - mean * scale
    ss = jnp.stack([scale, shift], axis=0).reshape(2, OC, 1)

    # Pass 2: apply BatchNorm affine (elementwise, parallel over M tiles).
    y_norm = pl.pallas_call(
        _bn_apply_kernel,
        out_shape=jax.ShapeDtypeStruct((OC, M), jnp.float32),
        grid=(n_t,),
        in_specs=[pl.BlockSpec((OC, tile_m), lambda m: (0, m)),
                  pl.BlockSpec((2, OC, 1), lambda m: (0, 0, 0))],
        out_specs=pl.BlockSpec((OC, tile_m), lambda m: (0, m)),
        compiler_params=cp,
    )(y, ss)

    return y_norm.reshape(OC, B, OH, OW)


def encoder_forward(x, params):
    """x: (B, nc, isize, isize) NCHW f32 -> (B, nef*8 * (isize//16)**2)."""
    B = x.shape[0]
    h = jnp.transpose(x, (1, 0, 2, 3))        # external boundary: NCHW -> CNHW
    for (w, b, gamma, beta) in params:
        h = _conv_lrelu_bn_layer(h, w, b, gamma, beta)
    # Back to (B, C, H, W) only at the external boundary; flatten like
    # hidden.view(batch_size, -1).
    return jnp.transpose(h, (1, 0, 2, 3)).reshape(B, -1)


def init_encoder_params(key, nc, nef):
    """Deterministic synthetic params. Conv weight (OC, IC, 4, 4), bias (OC,),
    BN gamma/beta (OC,) — BN running stats are unused in training-mode fwd."""
    chans = [(nc, nef), (nef, nef * 2), (nef * 2, nef * 4), (nef * 4, nef * 8)]
    params = []
    for (ic, oc) in chans:
        key, k1, k2, k3, k4 = jax.random.split(key, 5)
        fan_in = ic * 4 * 4
        w = jax.random.normal(k1, (oc, ic, 4, 4), jnp.float32) / jnp.sqrt(fan_in)
        b = 0.1 * jax.random.normal(k2, (oc,), jnp.float32)
        gamma = 1.0 + 0.1 * jax.random.normal(k3, (oc,), jnp.float32)
        beta = 0.1 * jax.random.normal(k4, (oc,), jnp.float32)
        params.append((w, b, gamma, beta))
    return params


if __name__ == "__main__":
    # Small shapes consistent with the module: nc=4, nef=8, isize=16, batch=2.
    # nz is unused by Encoder.forward.
    B, nc, nef, isize = 2, 4, 8, 16

    key = jax.random.PRNGKey(0)
    key, kx = jax.random.split(key)
    x = jax.random.normal(kx, (B, nc, isize, isize), jnp.float32)

    params = init_encoder_params(key, nc, nef)

    hidden = jax.jit(functools.partial(encoder_forward, params=params))(x)
    hidden = jax.block_until_ready(hidden)

    expected_dim = nef * 8 * (isize // 16) ** 2
    assert hidden.shape == (B, expected_dim), hidden.shape
    assert jnp.all(jnp.isfinite(hidden))
    print("KERNEL_OK")
</pallas_src>

<mosaic_0001>
module attributes {stable_mosaic.version = 11 : i64} {
  func.func @_conv_act_kernel(%arg0: i32, %arg1: memref<64x128xbf16, #tpu.memory_space<vmem>>, %arg2: memref<8x64xbf16, #tpu.memory_space<vmem>>, %arg3: memref<8x1xf32, #tpu.memory_space<vmem>>, %arg4: memref<8x128xf32, #tpu.memory_space<vmem>>, %arg5: memref<1x8x1xf32, #tpu.memory_space<vmem>>, %arg6: memref<1x8x1xf32, #tpu.memory_space<vmem>>) attributes {dimension_semantics = [#tpu.dimension_semantics<parallel>], iteration_bounds = array<i64: 1>, scalar_prefetch = 0 : i64, scratch_operands = 0 : i64, tpu.core_type = #tpu.core_type<tc>, window_params = [{transform_indices = @transform_0, window_bounds = array<i64: 64, 128>}, {pipeline_mode = #tpu.pipeline_mode<synchronous>, transform_indices = @transform_1, window_bounds = array<i64: 8, 64>}, {pipeline_mode = #tpu.pipeline_mode<synchronous>, transform_indices = @transform_2, window_bounds = array<i64: 8, 1>}, {transform_indices = @transform_3, window_bounds = array<i64: 8, 128>}, {transform_indices = @transform_4, window_bounds = array<i64: 1, 8, 1>}, {transform_indices = @transform_5, window_bounds = array<i64: 1, 8, 1>}]} {
    %c0 = arith.constant 0 : index
    %c0_0 = arith.constant 0 : index
    %0 = vector.load %arg2[%c0, %c0_0] : memref<8x64xbf16, #tpu.memory_space<vmem>>, vector<8x64xbf16>
    %c0_1 = arith.constant 0 : index
    %c0_2 = arith.constant 0 : index
    %1 = vector.load %arg1[%c0_1, %c0_2] : memref<64x128xbf16, #tpu.memory_space<vmem>>, vector<64x128xbf16>
    %cst = arith.constant dense<0.000000e+00> : vector<8x128xf32>
    %2 = tpu.matmul %0, %1, %cst {dimension_numbers = #tpu.dot_dimension_numbers<[1], [0], [0], [1], [0, 0, 1, 1], [], []>} : vector<8x64xbf16>, vector<64x128xbf16>, vector<8x128xf32> -> vector<8x128xf32>
    %c0_3 = arith.constant 0 : index
    %c0_4 = arith.constant 0 : index
    %3 = vector.load %arg3[%c0_3, %c0_4] : memref<8x1xf32, #tpu.memory_space<vmem>>, vector<8x1xf32>
    %4 = vector.broadcast %3 : vector<8x1xf32> to vector<8x128xf32>
    %5 = arith.addf %2, %4 : vector<8x128xf32>
    %cst_5 = arith.constant 0.000000e+00 : f32
    %6 = vector.broadcast %cst_5 : f32 to vector<8x128xf32>
    %7 = arith.cmpf ogt, %5, %6 : vector<8x128xf32>
    %cst_6 = arith.constant 2.000000e-01 : f32
    %8 = vector.broadcast %cst_6 : f32 to vector<8x128xf32>
    %9 = arith.mulf %8, %5 : vector<8x128xf32>
    %10 = arith.select %7, %5, %9 : vector<8x128xi1>, vector<8x128xf32>
    %c0_7 = arith.constant 0 : index
    %c0_8 = arith.constant 0 : index
    %11 = vector.load %arg4[%c0_7, %c0_8] : memref<8x128xf32, #tpu.memory_space<vmem>>, vector<8x128xf32>
    tpu.vector_store %arg4[%c0_7, %c0_8], %10 {strides = array<i32>} : memref<8x128xf32, #tpu.memory_space<vmem>>, vector<8x128xf32>,
    %cst_9 = arith.constant dense<0.000000e+00> : vector<8xf32>
    %12 = vector.multi_reduction <add>, %10, %cst_9 [1] : vector<8x128xf32> to vector<8xf32>
    %13 = vector.shape_cast %12 : vector<8xf32> to vector<8x1xf32>
    %c0_10 = arith.constant 0 : index
    %c0_11 = arith.constant 0 : index
    %c0_12 = arith.constant 0 : index
    %14 = vector.load %arg5[%c0_10, %c0_11, %c0_12] : memref<1x8x1xf32, #tpu.memory_space<vmem>>, vector<1x8x1xf32>
    %15 = vector.shape_cast %14 : vector<1x8x1xf32> to vector<8x1xf32>
    %16 = vector.shape_cast %13 : vector<8x1xf32> to vector<1x8x1xf32>
    tpu.vector_store %arg5[%c0_10, %c0_11, %c0_12], %16 {strides = array<i32>} : memref<1x8x1xf32, #tpu.memory_space<vmem>>, vector<1x8x1xf32>,
    %17 = arith.mulf %10, %10 : vector<8x128xf32>
    %cst_13 = arith.constant dense<0.000000e+00> : vector<8xf32>
    %18 = vector.multi_reduction <add>, %17, %cst_13 [1] : vector<8x128xf32> to vector<8xf32>
    %19 = vector.shape_cast %18 : vector<8xf32> to vector<8x1xf32>
    %c0_14 = arith.constant 0 : index
    %c0_15 = arith.constant 0 : index
    %c0_16 = arith.constant 0 : index
    %20 = vector.load %arg6[%c0_14, %c0_15, %c0_16] : memref<1x8x1xf32, #tpu.memory_space<vmem>>, vector<1x8x1xf32>
    %21 = vector.shape_cast %20 : vector<1x8x1xf32> to vector<8x1xf32>
    %22 = vector.shape_cast %19 : vector<8x1xf32> to vector<1x8x1xf32>
    tpu.vector_store %arg6[%c0_14, %c0_15, %c0_16], %22 {strides = array<i32>} : memref<1x8x1xf32, #tpu.memory_space<vmem>>, vector<1x8x1xf32>,
    return
  }
  func.func @transform_0(%arg0: i32) -> (i32, i32) {
    %c0_i32 = arith.constant 0 : i32
    %c0_i32_0 = arith.constant 0 : i32
    return %c0_i32, %arg0 : i32, i32
  }
  func.func @transform_1(%arg0: i32) -> (i32, i32) {
    %c0_i32 = arith.constant 0 : i32
    %c0_i32_0 = arith.constant 0 : i32
    %c0_i32_1 = arith.constant 0 : i32
    return %c0_i32, %c0_i32_0 : i32, i32
  }
  func.func @transform_2(%arg0: i32) -> (i32, i32) {
    %c0_i32 = arith.constant 0 : i32
    %c0_i32_0 = arith.constant 0 : i32
    %c0_i32_1 = arith.constant 0 : i32
    return %c0_i32, %c0_i32_0 : i32, i32
  }
  func.func @transform_3(%arg0: i32) -> (i32, i32) {
    %c0_i32 = arith.constant 0 : i32
    %c0_i32_0 = arith.constant 0 : i32
    return %c0_i32, %arg0 : i32, i32
  }
  func.func @transform_4(%arg0: i32) -> (i32, i32, i32) {
    %c0_i32 = arith.constant 0 : i32
    %c0_i32_0 = arith.constant 0 : i32
    %c0_i32_1 = arith.constant 0 : i32
    return %arg0, %c0_i32, %c0_i32_0 : i32, i32, i32
  }
  func.func @transform_5(%arg0: i32) -> (i32, i32, i32) {
    %c0_i32 = arith.constant 0 : i32
    %c0_i32_0 = arith.constant 0 : i32
    %c0_i32_1 = arith.constant 0 : i32
    return %arg0, %c0_i32, %c0_i32_0 : i32, i32, i32
  }
}

module attributes {stable_mosaic.version = 11 : i64} {
  func.func @_bn_apply_kernel(%arg0: i32, %arg1: memref<8x128xf32, #tpu.memory_space<vmem>>, %arg2: memref<2x8x1xf32, #tpu.memory_space<vmem>>, %arg3: memref<8x128xf32, #tpu.memory_space<vmem>>) attributes {dimension_semantics = [#tpu.dimension_semantics<parallel>], iteration_bounds = array<i64: 1>, scalar_prefetch = 0 : i64, scratch_operands = 0 : i64, tpu.core_type = #tpu.core_type<tc>, window_params = [{transform_indices = @transform_0, window_bounds = array<i64: 8, 128>}, {pipeline_mode = #tpu.pipeline_mode<synchronous>, transform_indices = @transform_1, window_bounds = array<i64: 2, 8, 1>}, {transform_indices = @transform_2, window_bounds = array<i64: 8, 128>}]} {
    %c0 = arith.constant 0 : index
    %c0_0 = arith.constant 0 : index
    %0 = vector.load %arg1[%c0, %c0_0] : memref<8x128xf32, #tpu.memory_space<vmem>>, vector<8x128xf32>
    %c0_1 = arith.constant 0 : index
    %c0_2 = arith.constant 0 : index
    %c0_3 = arith.constant 0 : index
    %1 = vector.load %arg2[%c0_1, %c0_2, %c0_3] : memref<2x8x1xf32, #tpu.memory_space<vmem>>, vector<1x8x1xf32>
    %2 = vector.shape_cast %1 : vector<1x8x1xf32> to vector<8x1xf32>
    %3 = vector.broadcast %2 : vector<8x1xf32> to vector<8x128xf32>
    %4 = arith.mulf %0, %3 : vector<8x128xf32>
    %c1 = arith.constant 1 : index
    %c0_4 = arith.constant 0 : index
    %c0_5 = arith.constant 0 : index
    %5 = vector.load %arg2[%c1, %c0_4, %c0_5] : memref<2x8x1xf32, #tpu.memory_space<vmem>>, vector<1x8x1xf32>
    %6 = vector.shape_cast %5 : vector<1x8x1xf32> to vector<8x1xf32>
    %7 = vector.broadcast %6 : vector<8x1xf32> to vector<8x128xf32>
    %8 = arith.addf %4, %7 : vector<8x128xf32>
    %c0_6 = arith.constant 0 : index
    %c0_7 = arith.constant 0 : index
    %9 = vector.load %arg3[%c0_6, %c0_7] : memref<8x128xf32, #tpu.memory_space<vmem>>, vector<8x128xf32>
    tpu.vector_store %arg3[%c0_6, %c0_7], %8 {strides = array<i32>} : memref<8x128xf32, #tpu.memory_space<vmem>>, vector<8x128xf32>,
    return
  }
  func.func @transform_0(%arg0: i32) -> (i32, i32) {
    %c0_i32 = arith.constant 0 : i32
    %c0_i32_0 = arith.constant 0 : i32
    return %c0_i32, %arg0 : i32, i32
  }
  func.func @transform_1(%arg0: i32) -> (i32, i32, i32) {
    %c0_i32 = arith.constant 0 : i32
    %c0_i32_0 = arith.constant 0 : i32
    %c0_i32_1 = arith.constant 0 : i32
    %c0_i32_2 = arith.constant 0 : i32
    return %c0_i32, %c0_i32_0, %c0_i32_1 : i32, i32, i32
  }
  func.func @transform_2(%arg0: i32) -> (i32, i32) {
    %c0_i32 = arith.constant 0 : i32
    %c0_i32_0 = arith.constant 0 : i32
    return %c0_i32, %arg0 : i32, i32
  }
}

module attributes {stable_mosaic.version = 11 : i64} {
  func.func @_conv_act_kernel(%arg0: i32, %arg1: memref<128x32xbf16, #tpu.memory_space<vmem>>, %arg2: memref<16x128xbf16, #tpu.memory_space<vmem>>, %arg3: memref<16x1xf32, #tpu.memory_space<vmem>>, %arg4: memref<16x32xf32, #tpu.memory_space<vmem>>, %arg5: memref<1x16x1xf32, #tpu.memory_space<vmem>>, %arg6: memref<1x16x1xf32, #tpu.memory_space<vmem>>) attributes {dimension_semantics = [#tpu.dimension_semantics<parallel>], iteration_bounds = array<i64: 1>, scalar_prefetch = 0 : i64, scratch_operands = 0 : i64, tpu.core_type = #tpu.core_type<tc>, window_params = [{transform_indices = @transform_0, window_bounds = array<i64: 128, 32>}, {pipeline_mode = #tpu.pipeline_mode<synchronous>, transform_indices = @transform_1, window_bounds = array<i64: 16, 128>}, {pipeline_mode = #tpu.pipeline_mode<synchronous>, transform_indices = @transform_2, window_bounds = array<i64: 16, 1>}, {transform_indices = @transform_3, window_bounds = array<i64: 16, 32>}, {transform_indices = @transform_4, window_bounds = array<i64: 1, 16, 1>}, {transform_indices = @transform_5, window_bounds = array<i64: 1, 16, 1>}]} {
    %c0 = arith.constant 0 : index
    %c0_0 = arith.constant 0 : index
    %0 = vector.load %arg2[%c0, %c0_0] : memref<16x128xbf16, #tpu.memory_space<vmem>>, vector<16x128xbf16>
    %c0_1 = arith.constant 0 : index
    %c0_2 = arith.constant 0 : index
    %1 = vector.load %arg1[%c0_1, %c0_2] : memref<128x32xbf16, #tpu.memory_space<vmem>>, vector<128x32xbf16>
    %cst = arith.constant dense<0.000000e+00> : vector<16x32xf32>
    %2 = tpu.matmul %0, %1, %cst {dimension_numbers = #tpu.dot_dimension_numbers<[1], [0], [0], [1], [0, 0, 1, 1], [], []>} : vector<16x128xbf16>, vector<128x32xbf16>, vector<16x32xf32> -> vector<16x32xf32>
    %c0_3 = arith.constant 0 : index
    %c0_4 = arith.constant 0 : index
    %3 = vector.load %arg3[%c0_3, %c0_4] : memref<16x1xf32, #tpu.memory_space<vmem>>, vector<16x1xf32>
    %4 = vector.broadcast %3 : vector<16x1xf32> to vector<16x32xf32>
    %5 = arith.addf %2, %4 : vector<16x32xf32>
    %cst_5 = arith.constant 0.000000e+00 : f32
    %6 = vector.broadcast %cst_5 : f32 to vector<16x32xf32>
    %7 = arith.cmpf ogt, %5, %6 : vector<16x32xf32>
    %cst_6 = arith.constant 2.000000e-01 : f32
    %8 = vector.broadcast %cst_6 : f32 to vector<16x32xf32>
    %9 = arith.mulf %8, %5 : vector<16x32xf32>
    %10 = arith.select %7, %5, %9 : vector<16x32xi1>, vector<16x32xf32>
    %c0_7 = arith.constant 0 : index
    %c0_8 = arith.constant 0 : index
    %11 = vector.load %arg4[%c0_7, %c0_8] : memref<16x32xf32, #tpu.memory_space<vmem>>, vector<16x32xf32>
    tpu.vector_store %arg4[%c0_7, %c0_8], %10 {strides = array<i32>} : memref<16x32xf32, #tpu.memory_space<vmem>>, vector<16x32xf32>,
    %cst_9 = arith.constant dense<0.000000e+00> : vector<16xf32>
    %12 = vector.multi_reduction <add>, %10, %cst_9 [1] : vector<16x32xf32> to vector<16xf32>
    %13 = vector.shape_cast %12 : vector<16xf32> to vector<16x1xf32>
    %c0_10 = arith.constant 0 : index
    %c0_11 = arith.constant 0 : index
    %c0_12 = arith.constant 0 : index
    %14 = vector.load %arg5[%c0_10, %c0_11, %c0_12] : memref<1x16x1xf32, #tpu.memory_space<vmem>>, vector<1x16x1xf32>
    %15 = vector.shape_cast %14 : vector<1x16x1xf32> to vector<16x1xf32>
    %16 = vector.shape_cast %13 : vector<16x1xf32> to vector<1x16x1xf32>
    tpu.vector_store %arg5[%c0_10, %c0_11, %c0_12], %16 {strides = array<i32>} : memref<1x16x1xf32, #tpu.memory_space<vmem>>, vector<1x16x1xf32>,
    %17 = arith.mulf %10, %10 : vector<16x32xf32>
    %cst_13 = arith.constant dense<0.000000e+00> : vector<16xf32>
    %18 = vector.multi_reduction <add>, %17, %cst_13 [1] : vector<16x32xf32> to vector<16xf32>
    %19 = vector.shape_cast %18 : vector<16xf32> to vector<16x1xf32>
    %c0_14 = arith.constant 0 : index
    %c0_15 = arith.constant 0 : index
    %c0_16 = arith.constant 0 : index
    %20 = vector.load %arg6[%c0_14, %c0_15, %c0_16] : memref<1x16x1xf32, #tpu.memory_space<vmem>>, vector<1x16x1xf32>
    %21 = vector.shape_cast %20 : vector<1x16x1xf32> to vector<16x1xf32>
    %22 = vector.shape_cast %19 : vector<16x1xf32> to vector<1x16x1xf32>
    tpu.vector_store %arg6[%c0_14, %c0_15, %c0_16], %22 {strides = array<i32>} : memref<1x16x1xf32, #tpu.memory_space<vmem>>, vector<1x16x1xf32>,
    return
  }
  func.func @transform_0(%arg0: i32) -> (i32, i32) {
    %c0_i32 = arith.constant 0 : i32
    %c0_i32_0 = arith.constant 0 : i32
    return %c0_i32, %arg0 : i32, i32
  }
  func.func @transform_1(%arg0: i32) -> (i32, i32) {
    %c0_i32 = arith.constant 0 : i32
    %c0_i32_0 = arith.constant 0 : i32
    %c0_i32_1 = arith.constant 0 : i32
    return %c0_i32, %c0_i32_0 : i32, i32
  }
  func.func @transform_2(%arg0: i32) -> (i32, i32) {
    %c0_i32 = arith.constant 0 : i32
    %c0_i32_0 = arith.constant 0 : i32
    %c0_i32_1 = arith.constant 0 : i32
    return %c0_i32, %c0_i32_0 : i32, i32
  }
  func.func @transform_3(%arg0: i32) -> (i32, i32) {
    %c0_i32 = arith.constant 0 : i32
    %c0_i32_0 = arith.constant 0 : i32
    return %c0_i32, %arg0 : i32, i32
  }
  func.func @transform_4(%arg0: i32) -> (i32, i32, i32) {
    %c0_i32 = arith.constant 0 : i32
    %c0_i32_0 = arith.constant 0 : i32
    %c0_i32_1 = arith.constant 0 : i32
    return %arg0, %c0_i32, %c0_i32_0 : i32, i32, i32
  }
  func.func @transform_5(%arg0: i32) -> (i32, i32, i32) {
    %c0_i32 = arith.constant 0 : i32
    %c0_i32_0 = arith.constant 0 : i32
    %c0_i32_1 = arith.constant 0 : i32
    return %arg0, %c0_i32, %c0_i32_0 : i32, i32, i32
  }
}

module attributes {stable_mosaic.version = 11 : i64} {
  func.func @_bn_apply_kernel(%arg0: i32, %arg1: memref<16x32xf32, #tpu.memory_space<vmem>>, %arg2: memref<2x16x1xf32, #tpu.memory_space<vmem>>, %arg3: memref<16x32xf32, #tpu.memory_space<vmem>>) attributes {dimension_semantics = [#tpu.dimension_semantics<parallel>], iteration_bounds = array<i64: 1>, scalar_prefetch = 0 : i64, scratch_operands = 0 : i64, tpu.core_type = #tpu.core_type<tc>, window_params = [{transform_indices = @transform_0, window_bounds = array<i64: 16, 32>}, {pipeline_mode = #tpu.pipeline_mode<synchronous>, transform_indices = @transform_1, window_bounds = array<i64: 2, 16, 1>}, {transform_indices = @transform_2, window_bounds = array<i64: 16, 32>}]} {
    %c0 = arith.constant 0 : index
    %c0_0 = arith.constant 0 : index
    %0 = vector.load %arg1[%c0, %c0_0] : memref<16x32xf32, #tpu.memory_space<vmem>>, vector<16x32xf32>
    %c0_1 = arith.constant 0 : index
    %c0_2 = arith.constant 0 : index
    %c0_3 = arith.constant 0 : index
    %1 = vector.load %arg2[%c0_1, %c0_2, %c0_3] : memref<2x16x1xf32, #tpu.memory_space<vmem>>, vector<1x16x1xf32>
    %2 = vector.shape_cast %1 : vector<1x16x1xf32> to vector<16x1xf32>
    %3 = vector.broadcast %2 : vector<16x1xf32> to vector<16x32xf32>
    %4 = arith.mulf %0, %3 : vector<16x32xf32>
    %c1 = arith.constant 1 : index
    %c0_4 = arith.constant 0 : index
    %c0_5 = arith.constant 0 : index
    %5 = vector.load %arg2[%c1, %c0_4, %c0_5] : memref<2x16x1xf32, #tpu.memory_space<vmem>>, vector<1x16x1xf32>
    %6 = vector.shape_cast %5 : vector<1x16x1xf32> to vector<16x1xf32>
    %7 = vector.broadcast %6 : vector<16x1xf32> to vector<16x32xf32>
    %8 = arith.addf %4, %7 : vector<16x32xf32>
    %c0_6 = arith.constant 0 : index
    %c0_7 = arith.constant 0 : index
    %9 = vector.load %arg3[%c0_6, %c0_7] : memref<16x32xf32, #tpu.memory_space<vmem>>, vector<16x32xf32>
    tpu.vector_store %arg3[%c0_6, %c0_7], %8 {strides = array<i32>} : memref<16x32xf32, #tpu.memory_space<vmem>>, vector<16x32xf32>,
    return
  }
  func.func @transform_0(%arg0: i32) -> (i32, i32) {
    %c0_i32 = arith.constant 0 : i32
    %c0_i32_0 = arith.constant 0 : i32
    return %c0_i32, %arg0 : i32, i32
  }
  func.func @transform_1(%arg0: i32) -> (i32, i32, i32) {
    %c0_i32 = arith.constant 0 : i32
    %c0_i32_0 = arith.constant 0 : i32
    %c0_i32_1 = arith.constant 0 : i32
    %c0_i32_2 = arith.constant 0 : i32
    return %c0_i32, %c0_i32_0, %c0_i32_1 : i32, i32, i32
  }
  func.func @transform_2(%arg0: i32) -> (i32, i32) {
    %c0_i32 = arith.constant 0 : i32
    %c0_i32_0 = arith.constant 0 : i32
    return %c0_i32, %arg0 : i32, i32
  }
}

module attributes {stable_mosaic.version = 11 : i64} {
  func.func @_conv_act_kernel(%arg0: i32, %arg1: memref<256x8xbf16, #tpu.memory_space<vmem>>, %arg2: memref<32x256xbf16, #tpu.memory_space<vmem>>, %arg3: memref<32x1xf32, #tpu.memory_space<vmem>>, %arg4: memref<32x8xf32, #tpu.memory_space<vmem>>, %arg5: memref<1x32x1xf32, #tpu.memory_space<vmem>>, %arg6: memref<1x32x1xf32, #tpu.memory_space<vmem>>) attributes {dimension_semantics = [#tpu.dimension_semantics<parallel>], iteration_bounds = array<i64: 1>, scalar_prefetch = 0 : i64, scratch_operands = 0 : i64, tpu.core_type = #tpu.core_type<tc>, window_params = [{transform_indices = @transform_0, window_bounds = array<i64: 256, 8>}, {pipeline_mode = #tpu.pipeline_mode<synchronous>, transform_indices = @transform_1, window_bounds = array<i64: 32, 256>}, {pipeline_mode = #tpu.pipeline_mode<synchronous>, transform_indices = @transform_2, window_bounds = array<i64: 32, 1>}, {transform_indices = @transform_3, window_bounds = array<i64: 32, 8>}, {transform_indices = @transform_4, window_bounds = array<i64: 1, 32, 1>}, {transform_indices = @transform_5, window_bounds = array<i64: 1, 32, 1>}]} {
    %c0 = arith.constant 0 : index
    %c0_0 = arith.constant 0 : index
    %0 = vector.load %arg2[%c0, %c0_0] : memref<32x256xbf16, #tpu.memory_space<vmem>>, vector<32x256xbf16>
    %c0_1 = arith.constant 0 : index
    %c0_2 = arith.constant 0 : index
    %1 = vector.load %arg1[%c0_1, %c0_2] : memref<256x8xbf16, #tpu.memory_space<vmem>>, vector<256x8xbf16>
    %cst = arith.constant dense<0.000000e+00> : vector<32x8xf32>
    %2 = tpu.matmul %0, %1, %cst {dimension_numbers = #tpu.dot_dimension_numbers<[1], [0], [0], [1], [0, 0, 1, 1], [], []>} : vector<32x256xbf16>, vector<256x8xbf16>, vector<32x8xf32> -> vector<32x8xf32>
    %c0_3 = arith.constant 0 : index
    %c0_4 = arith.constant 0 : index
    %3 = vector.load %arg3[%c0_3, %c0_4] : memref<32x1xf32, #tpu.memory_space<vmem>>, vector<32x1xf32>
    %4 = vector.broadcast %3 : vector<32x1xf32> to vector<32x8xf32>
    %5 = arith.addf %2, %4 : vector<32x8xf32>
    %cst_5 = arith.constant 0.000000e+00 : f32
    %6 = vector.broadcast %cst_5 : f32 to vector<32x8xf32>
    %7 = arith.cmpf ogt, %5, %6 : vector<32x8xf32>
    %cst_6 = arith.constant 2.000000e-01 : f32
    %8 = vector.broadcast %cst_6 : f32 to vector<32x8xf32>
    %9 = arith.mulf %8, %5 : vector<32x8xf32>
    %10 = arith.select %7, %5, %9 : vector<32x8xi1>, vector<32x8xf32>
    %c0_7 = arith.constant 0 : index
    %c0_8 = arith.constant 0 : index
    %11 = vector.load %arg4[%c0_7, %c0_8] : memref<32x8xf32, #tpu.memory_space<vmem>>, vector<32x8xf32>
    tpu.vector_store %arg4[%c0_7, %c0_8], %10 {strides = array<i32>} : memref<32x8xf32, #tpu.memory_space<vmem>>, vector<32x8xf32>,
    %cst_9 = arith.constant dense<0.000000e+00> : vector<32xf32>
    %12 = vector.multi_reduction <add>, %10, %cst_9 [1] : vector<32x8xf32> to vector<32xf32>
    %13 = vector.shape_cast %12 : vector<32xf32> to vector<32x1xf32>
    %c0_10 = arith.constant 0 : index
    %c0_11 = arith.constant 0 : index
    %c0_12 = arith.constant 0 : index
    %14 = vector.load %arg5[%c0_10, %c0_11, %c0_12] : memref<1x32x1xf32, #tpu.memory_space<vmem>>, vector<1x32x1xf32>
    %15 = vector.shape_cast %14 : vector<1x32x1xf32> to vector<32x1xf32>
    %16 = vector.shape_cast %13 : vector<32x1xf32> to vector<1x32x1xf32>
    tpu.vector_store %arg5[%c0_10, %c0_11, %c0_12], %16 {strides = array<i32>} : memref<1x32x1xf32, #tpu.memory_space<vmem>>, vector<1x32x1xf32>,
    %17 = arith.mulf %10, %10 : vector<32x8xf32>
    %cst_13 = arith.constant dense<0.000000e+00> : vector<32xf32>
    %18 = vector.multi_reduction <add>, %17, %cst_13 [1] : vector<32x8xf32> to vector<32xf32>
    %19 = vector.shape_cast %18 : vector<32xf32> to vector<32x1xf32>
    %c0_14 = arith.constant 0 : index
    %c0_15 = arith.constant 0 : index
    %c0_16 = arith.constant 0 : index
    %20 = vector.load %arg6[%c0_14, %c0_15, %c0_16] : memref<1x32x1xf32, #tpu.memory_space<vmem>>, vector<1x32x1xf32>
    %21 = vector.shape_cast %20 : vector<1x32x1xf32> to vector<32x1xf32>
    %22 = vector.shape_cast %19 : vector<32x1xf32> to vector<1x32x1xf32>
    tpu.vector_store %arg6[%c0_14, %c0_15, %c0_16], %22 {strides = array<i32>} : memref<1x32x1xf32, #tpu.memory_space<vmem>>, vector<1x32x1xf32>,
    return
  }
  func.func @transform_0(%arg0: i32) -> (i32, i32) {
    %c0_i32 = arith.constant 0 : i32
    %c0_i32_0 = arith.constant 0 : i32
    return %c0_i32, %arg0 : i32, i32
  }
  func.func @transform_1(%arg0: i32) -> (i32, i32) {
    %c0_i32 = arith.constant 0 : i32
    %c0_i32_0 = arith.constant 0 : i32
    %c0_i32_1 = arith.constant 0 : i32
    return %c0_i32, %c0_i32_0 : i32, i32
  }
  func.func @transform_2(%arg0: i32) -> (i32, i32) {
    %c0_i32 = arith.constant 0 : i32
    %c0_i32_0 = arith.constant 0 : i32
    %c0_i32_1 = arith.constant 0 : i32
    return %c0_i32, %c0_i32_0 : i32, i32
  }
  func.func @transform_3(%arg0: i32) -> (i32, i32) {
    %c0_i32 = arith.constant 0 : i32
    %c0_i32_0 = arith.constant 0 : i32
    return %c0_i32, %arg0 : i32, i32
  }
  func.func @transform_4(%arg0: i32) -> (i32, i32, i32) {
    %c0_i32 = arith.constant 0 : i32
    %c0_i32_0 = arith.constant 0 : i32
    %c0_i32_1 = arith.constant 0 : i32
    return %arg0, %c0_i32, %c0_i32_0 : i32, i32, i32
  }
  func.func @transform_5(%arg0: i32) -> (i32, i32, i32) {
    %c0_i32 = arith.constant 0 : i32
    %c0_i32_0 = arith.constant 0 : i32
    %c0_i32_1 = arith.constant 0 : i32
    return %arg0, %c0_i32, %c0_i32_0 : i32, i32, i32
  }
}

module attributes {stable_mosaic.version = 11 : i64} {
  func.func @_bn_apply_kernel(%arg0: i32, %arg1: memref<32x8xf32, #tpu.memory_space<vmem>>, %arg2: memref<2x32x1xf32, #tpu.memory_space<vmem>>, %arg3: memref<32x8xf32, #tpu.memory_space<vmem>>) attributes {dimension_semantics = [#tpu.dimension_semantics<parallel>], iteration_bounds = array<i64: 1>, scalar_prefetch = 0 : i64, scratch_operands = 0 : i64, tpu.core_type = #tpu.core_type<tc>, window_params = [{transform_indices = @transform_0, window_bounds = array<i64: 32, 8>}, {pipeline_mode = #tpu.pipeline_mode<synchronous>, transform_indices = @transform_1, window_bounds = array<i64: 2, 32, 1>}, {transform_indices = @transform_2, window_bounds = array<i64: 32, 8>}]} {
    %c0 = arith.constant 0 : index
    %c0_0 = arith.constant 0 : index
    %0 = vector.load %arg1[%c0, %c0_0] : memref<32x8xf32, #tpu.memory_space<vmem>>, vector<32x8xf32>
    %c0_1 = arith.constant 0 : index
    %c0_2 = arith.constant 0 : index
    %c0_3 = arith.constant 0 : index
    %1 = vector.load %arg2[%c0_1, %c0_2, %c0_3] : memref<2x32x1xf32, #tpu.memory_space<vmem>>, vector<1x32x1xf32>
    %2 = vector.shape_cast %1 : vector<1x32x1xf32> to vector<32x1xf32>
    %3 = vector.broadcast %2 : vector<32x1xf32> to vector<32x8xf32>
    %4 = arith.mulf %0, %3 : vector<32x8xf32>
    %c1 = arith.constant 1 : index
    %c0_4 = arith.constant 0 : index
    %c0_5 = arith.constant 0 : index
    %5 = vector.load %arg2[%c1, %c0_4, %c0_5] : memref<2x32x1xf32, #tpu.memory_space<vmem>>, vector<1x32x1xf32>
    %6 = vector.shape_cast %5 : vector<1x32x1xf32> to vector<32x1xf32>
    %7 = vector.broadcast %6 : vector<32x1xf32> to vector<32x8xf32>
    %8 = arith.addf %4, %7 : vector<32x8xf32>
    %c0_6 = arith.constant 0 : index
    %c0_7 = arith.constant 0 : index
    %9 = vector.load %arg3[%c0_6, %c0_7] : memref<32x8xf32, #tpu.memory_space<vmem>>, vector<32x8xf32>
    tpu.vector_store %arg3[%c0_6, %c0_7], %8 {strides = array<i32>} : memref<32x8xf32, #tpu.memory_space<vmem>>, vector<32x8xf32>,
    return
  }
  func.func @transform_0(%arg0: i32) -> (i32, i32) {
    %c0_i32 = arith.constant 0 : i32
    %c0_i32_0 = arith.constant 0 : i32
    return %c0_i32, %arg0 : i32, i32
  }
  func.func @transform_1(%arg0: i32) -> (i32, i32, i32) {
    %c0_i32 = arith.constant 0 : i32
    %c0_i32_0 = arith.constant 0 : i32
    %c0_i32_1 = arith.constant 0 : i32
    %c0_i32_2 = arith.constant 0 : i32
    return %c0_i32, %c0_i32_0, %c0_i32_1 : i32, i32, i32
  }
  func.func @transform_2(%arg0: i32) -> (i32, i32) {
    %c0_i32 = arith.constant 0 : i32
    %c0_i32_0 = arith.constant 0 : i32
    return %c0_i32, %arg0 : i32, i32
  }
}

module attributes {stable_mosaic.version = 11 : i64} {
  func.func @_conv_act_kernel(%arg0: i32, %arg1: memref<512x2xbf16, #tpu.memory_space<vmem>>, %arg2: memref<64x512xbf16, #tpu.memory_space<vmem>>, %arg3: memref<64x1xf32, #tpu.memory_space<vmem>>, %arg4: memref<64x2xf32, #tpu.memory_space<vmem>>, %arg5: memref<1x64x1xf32, #tpu.memory_space<vmem>>, %arg6: memref<1x64x1xf32, #tpu.memory_space<vmem>>) attributes {dimension_semantics = [#tpu.dimension_semantics<parallel>], iteration_bounds = array<i64: 1>, scalar_prefetch = 0 : i64, scratch_operands = 0 : i64, tpu.core_type = #tpu.core_type<tc>, window_params = [{transform_indices = @transform_0, window_bounds = array<i64: 512, 2>}, {pipeline_mode = #tpu.pipeline_mode<synchronous>, transform_indices = @transform_1, window_bounds = array<i64: 64, 512>}, {pipeline_mode = #tpu.pipeline_mode<synchronous>, transform_indices = @transform_2, window_bounds = array<i64: 64, 1>}, {transform_indices = @transform_3, window_bounds = array<i64: 64, 2>}, {transform_indices = @transform_4, window_bounds = array<i64: 1, 64, 1>}, {transform_indices = @transform_5, window_bounds = array<i64: 1, 64, 1>}]} {
    %c0 = arith.constant 0 : index
    %c0_0 = arith.constant 0 : index
    %0 = vector.load %arg2[%c0, %c0_0] : memref<64x512xbf16, #tpu.memory_space<vmem>>, vector<64x512xbf16>
    %c0_1 = arith.constant 0 : index
    %c0_2 = arith.constant 0 : index
    %1 = vector.load %arg1[%c0_1, %c0_2] : memref<512x2xbf16, #tpu.memory_space<vmem>>, vector<512x2xbf16>
    %cst = arith.constant dense<0.000000e+00> : vector<64x2xf32>
    %2 = tpu.matmul %0, %1, %cst {dimension_numbers = #tpu.dot_dimension_numbers<[1], [0], [0], [1], [0, 0, 1, 1], [], []>} : vector<64x512xbf16>, vector<512x2xbf16>, vector<64x2xf32> -> vector<64x2xf32>
    %c0_3 = arith.constant 0 : index
    %c0_4 = arith.constant 0 : index
    %3 = vector.load %arg3[%c0_3, %c0_4] : memref<64x1xf32, #tpu.memory_space<vmem>>, vector<64x1xf32>
    %4 = vector.broadcast %3 : vector<64x1xf32> to vector<64x2xf32>
    %5 = arith.addf %2, %4 : vector<64x2xf32>
    %cst_5 = arith.constant 0.000000e+00 : f32
    %6 = vector.broadcast %cst_5 : f32 to vector<64x2xf32>
    %7 = arith.cmpf ogt, %5, %6 : vector<64x2xf32>
    %cst_6 = arith.constant 2.000000e-01 : f32
    %8 = vector.broadcast %cst_6 : f32 to vector<64x2xf32>
    %9 = arith.mulf %8, %5 : vector<64x2xf32>
    %10 = arith.select %7, %5, %9 : vector<64x2xi1>, vector<64x2xf32>
    %c0_7 = arith.constant 0 : index
    %c0_8 = arith.constant 0 : index
    %11 = vector.load %arg4[%c0_7, %c0_8] : memref<64x2xf32, #tpu.memory_space<vmem>>, vector<64x2xf32>
    tpu.vector_store %arg4[%c0_7, %c0_8], %10 {strides = array<i32>} : memref<64x2xf32, #tpu.memory_space<vmem>>, vector<64x2xf32>,
    %cst_9 = arith.constant dense<0.000000e+00> : vector<64xf32>
    %12 = vector.multi_reduction <add>, %10, %cst_9 [1] : vector<64x2xf32> to vector<64xf32>
    %13 = vector.shape_cast %12 : vector<64xf32> to vector<64x1xf32>
    %c0_10 = arith.constant 0 : index
    %c0_11 = arith.constant 0 : index
    %c0_12 = arith.constant 0 : index
    %14 = vector.load %arg5[%c0_10, %c0_11, %c0_12] : memref<1x64x1xf32, #tpu.memory_space<vmem>>, vector<1x64x1xf32>
    %15 = vector.shape_cast %14 : vector<1x64x1xf32> to vector<64x1xf32>
    %16 = vector.shape_cast %13 : vector<64x1xf32> to vector<1x64x1xf32>
    tpu.vector_store %arg5[%c0_10, %c0_11, %c0_12], %16 {strides = array<i32>} : memref<1x64x1xf32, #tpu.memory_space<vmem>>, vector<1x64x1xf32>,
    %17 = arith.mulf %10, %10 : vector<64x2xf32>
    %cst_13 = arith.constant dense<0.000000e+00> : vector<64xf32>
    %18 = vector.multi_reduction <add>, %17, %cst_13 [1] : vector<64x2xf32> to vector<64xf32>
    %19 = vector.shape_cast %18 : vector<64xf32> to vector<64x1xf32>
    %c0_14 = arith.constant 0 : index
    %c0_15 = arith.constant 0 : index
    %c0_16 = arith.constant 0 : index
    %20 = vector.load %arg6[%c0_14, %c0_15, %c0_16] : memref<1x64x1xf32, #tpu.memory_space<vmem>>, vector<1x64x1xf32>
    %21 = vector.shape_cast %20 : vector<1x64x1xf32> to vector<64x1xf32>
    %22 = vector.shape_cast %19 : vector<64x1xf32> to vector<1x64x1xf32>
    tpu.vector_store %arg6[%c0_14, %c0_15, %c0_16], %22 {strides = array<i32>} : memref<1x64x1xf32, #tpu.memory_space<vmem>>, vector<1x64x1xf32>,
    return
  }
  func.func @transform_0(%arg0: i32) -> (i32, i32) {
    %c0_i32 = arith.constant 0 : i32
    %c0_i32_0 = arith.constant 0 : i32
    return %c0_i32, %arg0 : i32, i32
  }
  func.func @transform_1(%arg0: i32) -> (i32, i32) {
    %c0_i32 = arith.constant 0 : i32
    %c0_i32_0 = arith.constant 0 : i32
    %c0_i32_1 = arith.constant 0 : i32
    return %c0_i32, %c0_i32_0 : i32, i32
  }
  func.func @transform_2(%arg0: i32) -> (i32, i32) {
    %c0_i32 = arith.constant 0 : i32
    %c0_i32_0 = arith.constant 0 : i32
    %c0_i32_1 = arith.constant 0 : i32
    return %c0_i32, %c0_i32_0 : i32, i32
  }
  func.func @transform_3(%arg0: i32) -> (i32, i32) {
    %c0_i32 = arith.constant 0 : i32
    %c0_i32_0 = arith.constant 0 : i32
    return %c0_i32, %arg0 : i32, i32
  }
  func.func @transform_4(%arg0: i32) -> (i32, i32, i32) {
    %c0_i32 = arith.constant 0 : i32
    %c0_i32_0 = arith.constant 0 : i32
    %c0_i32_1 = arith.constant 0 : i32
    return %arg0, %c0_i32, %c0_i32_0 : i32, i32, i32
  }
  func.func @transform_5(%arg0: i32) -> (i32, i32, i32) {
    %c0_i32 = arith.constant 0 : i32
    %c0_i32_0 = arith.constant 0 : i32
    %c0_i32_1 = arith.constant 0 : i32
    return %arg0, %c0_i32, %c0_i32_0 : i32, i32, i32
  }
}

module attributes {stable_mosaic.version = 11 : i64} {
  func.func @_bn_apply_kernel(%arg0: i32, %arg1: memref<64x2xf32, #tpu.memory_space<vmem>>, %arg2: memref<2x64x1xf32, #tpu.memory_space<vmem>>, %arg3: memref<64x2xf32, #tpu.memory_space<vmem>>) attributes {dimension_semantics = [#tpu.dimension_semantics<parallel>], iteration_bounds = array<i64: 1>, scalar_prefetch = 0 : i64, scratch_operands = 0 : i64, tpu.core_type = #tpu.core_type<tc>, window_params = [{transform_indices = @transform_0, window_bounds = array<i64: 64, 2>}, {pipeline_mode = #tpu.pipeline_mode<synchronous>, transform_indices = @transform_1, window_bounds = array<i64: 2, 64, 1>}, {transform_indices = @transform_2, window_bounds = array<i64: 64, 2>}]} {
    %c0 = arith.constant 0 : index
    %c0_0 = arith.constant 0 : index
    %0 = vector.load %arg1[%c0, %c0_0] : memref<64x2xf32, #tpu.memory_space<vmem>>, vector<64x2xf32>
    %c0_1 = arith.constant 0 : index
    %c0_2 = arith.constant 0 : index
    %c0_3 = arith.constant 0 : index
    %1 = vector.load %arg2[%c0_1, %c0_2, %c0_3] : memref<2x64x1xf32, #tpu.memory_space<vmem>>, vector<1x64x1xf32>
    %2 = vector.shape_cast %1 : vector<1x64x1xf32> to vector<64x1xf32>
    %3 = vector.broadcast %2 : vector<64x1xf32> to vector<64x2xf32>
    %4 = arith.mulf %0, %3 : vector<64x2xf32>
    %c1 = arith.constant 1 : index
    %c0_4 = arith.constant 0 : index
    %c0_5 = arith.constant 0 : index
    %5 = vector.load %arg2[%c1, %c0_4, %c0_5] : memref<2x64x1xf32, #tpu.memory_space<vmem>>, vector<1x64x1xf32>
    %6 = vector.shape_cast %5 : vector<1x64x1xf32> to vector<64x1xf32>
    %7 = vector.broadcast %6 : vector<64x1xf32> to vector<64x2xf32>
    %8 = arith.addf %4, %7 : vector<64x2xf32>
    %c0_6 = arith.constant 0 : index
    %c0_7 = arith.constant 0 : index
    %9 = vector.load %arg3[%c0_6, %c0_7] : memref<64x2xf32, #tpu.memory_space<vmem>>, vector<64x2xf32>
    tpu.vector_store %arg3[%c0_6, %c0_7], %8 {strides = array<i32>} : memref<64x2xf32, #tpu.memory_space<vmem>>, vector<64x2xf32>,
    return
  }
  func.func @transform_0(%arg0: i32) -> (i32, i32) {
    %c0_i32 = arith.constant 0 : i32
    %c0_i32_0 = arith.constant 0 : i32
    return %c0_i32, %arg0 : i32, i32
  }
  func.func @transform_1(%arg0: i32) -> (i32, i32, i32) {
    %c0_i32 = arith.constant 0 : i32
    %c0_i32_0 = arith.constant 0 : i32
    %c0_i32_1 = arith.constant 0 : i32
    %c0_i32_2 = arith.constant 0 : i32
    return %c0_i32, %c0_i32_0, %c0_i32_1 : i32, i32, i32
  }
  func.func @transform_2(%arg0: i32) -> (i32, i32) {
    %c0_i32 = arith.constant 0 : i32
    %c0_i32_0 = arith.constant 0 : i32
    return %c0_i32, %arg0 : i32, i32
  }
}

</mosaic_0001>

<llo_original>
// kernel: encoder_forward.9
$region0: #{encoder_forward.9}
  #allocation0 [shape = 'u32[]', space=smem, size = 0x4, offset = 0x4, fixed_abs, tag = 'smem constant byte address 0x4 - core index']
  #allocation1 [shape = 'u32[72,128]{1,0:T(1,128)}', space=vmem, size = 0x9000, scoped, tag = 'internal scratch']
  %s0 = inlined_call_operand.vmem [shape: f32[8,128], index: 0, kind: input, shape index: {}]
  %s1 = inlined_call_operand.vmem [shape: f32[2,8,1], index: 1, kind: input, shape index: {}]
  %s2 = inlined_call_operand.vmem [shape: f32[8,128], index: 2, kind: output, shape index: {}]
  %s3 = sld [smem:[#allocation0]]
  $region18: #{encoder_forward.9} parent=0
    _
  %s5 = ssub.s32 1, %s3
  %s6 = scalar_select 0, %s5, %s3
  // Predicated region
  $region2: #{encoder_forward.9} parent=0 // pred_check
    _
  $region3: #{encoder_forward.9} parent=0 // pred_check_branch
    %8 = sbr.rel (0) target = $region5
  $region4: #{encoder_forward.9} parent=0 // pred_region
    _
  $region5: #{encoder_forward.9} parent=0 // pred_fallthru
    _
  // Predicated region
  $region6: #{encoder_forward.9} parent=0 // pred_check
    _
  $region7: #{encoder_forward.9} parent=0 // pred_check_branch
    %10 = sbr.rel (0) target = $region9
  $region8: #{encoder_forward.9} parent=0 // pred_region
    _
  $region9: #{encoder_forward.9} parent=0 // pred_fallthru
    _
  %v11 = vld [vmem:[%s0] sm:$0xff]
  %v12 = vld [vmem:[%s1] sm:$0xff]
  %14 = vset.pattern.permute.xlu0 0
  %15 = vperm.xlu0 %14, %v12
  %v16 = vpop.permute.xlu0 %15
  %v18 = vmul.f32 %v11, %v16
  %s19 = scalar_lea.vmem %s1, 8
  %v20 = vld [vmem:[%s19] sm:$0xff]
  %22 = vset.pattern.permute.xlu0 0
  %23 = vperm.xlu0 %22, %v20
  %v24 = vpop.permute.xlu0 %23
  %v26 = vadd.f32 %v18, %v24
  %27 = vst [vmem:[%s2] sm:$0xff] %v26
  // Predicated region
  $region10: #{encoder_forward.9} parent=0 // pred_check
    _
  $region11: #{encoder_forward.9} parent=0 // pred_check_branch
    %29 = sbr.rel (0) target = $region13
  $region12: #{encoder_forward.9} parent=0 // pred_region
    _
  $region13: #{encoder_forward.9} parent=0 // pred_fallthru
    _
  // Predicated region
  $region14: #{encoder_forward.9} parent=0 // pred_check
    _
  $region15: #{encoder_forward.9} parent=0 // pred_check_branch
    %31 = sbr.rel (0) target = $region17
  $region16: #{encoder_forward.9} parent=0 // pred_region
    _
  $region17: #{encoder_forward.9} parent=0 // pred_fallthru
    _

// kernel: encoder_forward.8
$region0: #{encoder_forward.8}
  #allocation0 [shape = 'u32[]', space=smem, size = 0x4, offset = 0x4, fixed_abs, tag = 'smem constant byte address 0x4 - core index']
  #allocation1 [shape = 'u32[72,128]{1,0:T(1,128)}', space=vmem, size = 0x9000, scoped, tag = 'internal scratch']
  %s0 = inlined_call_operand.vmem [shape: bf16[64,128], index: 0, kind: input, shape index: {}]
  %s1 = inlined_call_operand.vmem [shape: bf16[8,64], index: 1, kind: input, shape index: {}]
  %s2 = inlined_call_operand.vmem [shape: f32[8,1], index: 2, kind: input, shape index: {}]
  %s3 = inlined_call_operand.vmem [shape: f32[8,128], index: 3, kind: output, shape index: {0}]
  %s4 = inlined_call_operand.vmem [shape: f32[1,8,1], index: 4, kind: output, shape index: {1}]
  %s5 = inlined_call_operand.vmem [shape: f32[1,8,1], index: 5, kind: output, shape index: {2}]
  %6 = xla_tuple %s3, %s4, %s5
  %s7 = sld [smem:[#allocation0]]
  $region38: #{encoder_forward.8} parent=0
    _
  %s9 = ssub.s32 1, %s7
  %s10 = scalar_select 0, %s9, %s7
  // Predicated region
  $region2: #{encoder_forward.8} parent=0 // pred_check
    _
  $region3: #{encoder_forward.8} parent=0 // pred_check_branch
    %12 = sbr.rel (0) target = $region5
  $region4: #{encoder_forward.8} parent=0 // pred_region
    _
  $region5: #{encoder_forward.8} parent=0 // pred_fallthru
    _
  // Predicated region
  $region6: #{encoder_forward.8} parent=0 // pred_check
    _
  $region7: #{encoder_forward.8} parent=0 // pred_check_branch
    %14 = sbr.rel (0) target = $region9
  $region8: #{encoder_forward.8} parent=0 // pred_region
    _
  $region9: #{encoder_forward.8} parent=0 // pred_fallthru
    _
  // Predicated region
  $region10: #{encoder_forward.8} parent=0 // pred_check
    _
  $region11: #{encoder_forward.8} parent=0 // pred_check_branch
    %16 = sbr.rel (0) target = $region13
  $region12: #{encoder_forward.8} parent=0 // pred_region
    _
  $region13: #{encoder_forward.8} parent=0 // pred_fallthru
    _
  %v18 = vld [vmem:[%s1] sm:$0xf]
  %v19 = vld [vmem:[%s0] sm:$0xf]
  %v20 = vld [vmem:[%s0 + $0x4] sm:$0xf]
  %v21 = vld [vmem:[%s0 + $0x8] sm:$0xf]
  %v22 = vld [vmem:[%s0 + $0xc] sm:$0xf]
  %v23 = vld [vmem:[%s0 + $0x10] sm:$0xf]
  %v24 = vld [vmem:[%s0 + $0x14] sm:$0xf]
  %v25 = vld [vmem:[%s0 + $0x18] sm:$0xf]
  %v26 = vld [vmem:[%s0 + $0x1c] sm:$0xf]
  %v27 = vld [vmem:[%s2] sm:$0xff]
  %29 = vset.pattern.permute.xlu0 0
  %30 = vperm.xlu0 %29, %v27
  %v31 = vpop.permute.xlu0 %30
  %v41 = vunpack.c.l.b16 %v19
  %v42 = vunpack.c.l.b16 %v20
  %v43 = vunpack.c.l.b16 %v21
  %v44 = vunpack.c.l.b16 %v22
  %v45 = vunpack.c.l.b16 %v23
  %v46 = vunpack.c.l.b16 %v24
  %v47 = vunpack.c.l.b16 %v25
  %v48 = vunpack.c.l.b16 %v26
  %v49 = vpack.c.b16 %v42, %v41
  %v50 = vpack.c.b16 %v44, %v43
  %v51 = vpack.c.b16 %v46, %v45
  %v52 = vpack.c.b16 %v48, %v47
  %vm57 = vcmask 523264
  %v59 = vsel %vm57, %v18, 0
  %61 = vmatpush.bf16.msra.mxu0 0
  %62 = vmatpush.bf16.msra.mxu0 0
  %63 = vmatpush.bf16.msra.mxu0 0
  %64 = vmatpush.bf16.msra.mxu0 0
  %65 = vmatpush.bf16.msra.mxu0 %v52
  %66 = vmatpush.bf16.msra.mxu0 %v51
  %67 = vmatpush.bf16.msra.mxu0 %v50
  %68 = vmatpush.bf16.msra.mxu0 %v49
  %69 = vmatmul.bf16.gmra.mxu0 %v59
  %v70 = vpop.f32.mrf.mxu0
  %v71 = vadd.f32 %v31, %v70
  %v72 = vpop.f32.mrf.mxu0
  %73 = vdwg.mxu0
  %vm74 = vcmp.gt.f32.partialorder %v71, 0.0
  %v75 = vmul.f32 %v71, 0.2
  %v76 = vsel %vm74, %v71, %v75
  %77 = vst [vmem:[%s3] sm:$0xff] %v76
  %78 = vadd.xlane.f32.xlu0 %v76
  %v79 = vpop.xlane.xlu0 %78
  %vm80 = vcmask 7168
  %81 = vst.msk [vmem:[%s4] sm:$0xff] %vm80, %v79
  %v82 = vmul.f32 %v76, %v76
  %83 = vadd.xlane.f32.xlu0 %v82
  %v84 = vpop.xlane.xlu0 %83
  %85 = vst.msk [vmem:[%s5] sm:$0xff] %vm80, %v84
  // Predicated region
  $region14: #{encoder_forward.8} parent=0 // pred_check
    _
  $region15: #{encoder_forward.8} parent=0 // pred_check_branch
    %87 = sbr.rel (0) target = $region17
  $region16: #{encoder_forward.8} parent=0 // pred_region
    _
  $region17: #{encoder_forward.8} parent=0 // pred_fallthru
    _
  // Predicated region
  $region18: #{encoder_forward.8} parent=0 // pred_check
    _
  $region19: #{encoder_forward.8} parent=0 // pred_check_branch
    %89 = sbr.rel (0) target = $region21
  $region20: #{encoder_forward.8} parent=0 // pred_region
    _
  $region21: #{encoder_forward.8} parent=0 // pred_fallthru
    _
  // Predicated region
  $region22: #{encoder_forward.8} parent=0 // pred_check
    _
  $region23: #{encoder_forward.8} parent=0 // pred_check_branch
    %91 = sbr.rel (0) target = $region25
  $region24: #{encoder_forward.8} parent=0 // pred_region
    _
  $region25: #{encoder_forward.8} parent=0 // pred_fallthru
    _
  // Predicated region
  $region26: #{encoder_forward.8} parent=0 // pred_check
    _
  $region27: #{encoder_forward.8} parent=0 // pred_check_branch
    %93 = sbr.rel (0) target = $region29
  $region28: #{encoder_forward.8} parent=0 // pred_region
    _
  $region29: #{encoder_forward.8} parent=0 // pred_fallthru
    _
  // Predicated region
  $region30: #{encoder_forward.8} parent=0 // pred_check
    _
  $region31: #{encoder_forward.8} parent=0 // pred_check_branch
    %95 = sbr.rel (0) target = $region33
  $region32: #{encoder_forward.8} parent=0 // pred_region
    _
  $region33: #{encoder_forward.8} parent=0 // pred_fallthru
    _
  // Predicated region
  $region34: #{encoder_forward.8} parent=0 // pred_check
    _
  $region35: #{encoder_forward.8} parent=0 // pred_check_branch
    %97 = sbr.rel (0) target = $region37
  $region36: #{encoder_forward.8} parent=0 // pred_region
    _
  $region37: #{encoder_forward.8} parent=0 // pred_fallthru
    _

// kernel: encoder_forward.10
$region0: #{encoder_forward.10}
  #allocation0 [shape = 'u32[]', space=smem, size = 0x4, offset = 0x4, fixed_abs, tag = 'smem constant byte address 0x4 - core index']
  #allocation1 [shape = 'u32[72,128]{1,0:T(1,128)}', space=vmem, size = 0x9000, scoped, tag = 'internal scratch']
  %s0 = inlined_call_operand.vmem [shape: bf16[128,32], index: 0, kind: input, shape index: {}]
  %s1 = inlined_call_operand.vmem [shape: bf16[16,128], index: 1, kind: input, shape index: {}]
  %s2 = inlined_call_operand.vmem [shape: f32[16,1], index: 2, kind: input, shape index: {}]
  %s3 = inlined_call_operand.vmem [shape: f32[16,32], index: 3, kind: output, shape index: {0}]
  %s4 = inlined_call_operand.vmem [shape: f32[1,16,1], index: 4, kind: output, shape index: {1}]
  %s5 = inlined_call_operand.vmem [shape: f32[1,16,1], index: 5, kind: output, shape index: {2}]
  %6 = xla_tuple %s3, %s4, %s5
  %s7 = sld [smem:[#allocation0]]
  $region38: #{encoder_forward.10} parent=0
    _
  %s9 = ssub.s32 1, %s7
  %s10 = scalar_select 0, %s9, %s7
  // Predicated region
  $region2: #{encoder_forward.10} parent=0 // pred_check
    _
  $region3: #{encoder_forward.10} parent=0 // pred_check_branch
    %12 = sbr.rel (0) target = $region5
  $region4: #{encoder_forward.10} parent=0 // pred_region
    _
  $region5: #{encoder_forward.10} parent=0 // pred_fallthru
    _
  // Predicated region
  $region6: #{encoder_forward.10} parent=0 // pred_check
    _
  $region7: #{encoder_forward.10} parent=0 // pred_check_branch
    %14 = sbr.rel (0) target = $region9
  $region8: #{encoder_forward.10} parent=0 // pred_region
    _
  $region9: #{encoder_forward.10} parent=0 // pred_fallthru
    _
  // Predicated region
  $region10: #{encoder_forward.10} parent=0 // pred_check
    _
  $region11: #{encoder_forward.10} parent=0 // pred_check_branch
    %16 = sbr.rel (0) target = $region13
  $region12: #{encoder_forward.10} parent=0 // pred_region
    _
  $region13: #{encoder_forward.10} parent=0 // pred_fallthru
    _
  %v17 = vld [vmem:[%s1] sm:$0xf]
  %v18 = vld [vmem:[%s1 + $0x4] sm:$0xf]
  %v19 = vld [vmem:[%s0] sm:$0xf]
  %v20 = vld [vmem:[%s0 + $0x4] sm:$0xf]
  %v21 = vld [vmem:[%s0 + $0x8] sm:$0xf]
  %v22 = vld [vmem:[%s0 + $0xc] sm:$0xf]
  %v23 = vld [vmem:[%s0 + $0x10] sm:$0xf]
  %v24 = vld [vmem:[%s0 + $0x14] sm:$0xf]
  %v25 = vld [vmem:[%s0 + $0x18] sm:$0xf]
  %v26 = vld [vmem:[%s0 + $0x1c] sm:$0xf]
  %v27 = vld [vmem:[%s0 + $0x20] sm:$0xf]
  %v28 = vld [vmem:[%s0 + $0x24] sm:$0xf]
  %v29 = vld [vmem:[%s0 + $0x28] sm:$0xf]
  %v30 = vld [vmem:[%s0 + $0x2c] sm:$0xf]
  %v31 = vld [vmem:[%s0 + $0x30] sm:$0xf]
  %v32 = vld [vmem:[%s0 + $0x34] sm:$0xf]
  %v33 = vld [vmem:[%s0 + $0x38] sm:$0xf]
  %v34 = vld [vmem:[%s0 + $0x3c] sm:$0xf]
  %v35 = vld [vmem:[%s2] sm:$0xff]
  %v36 = vld [vmem:[%s2 + $0x8] sm:$0xff]
  %38 = vset.pattern.permute.xlu0 0
  %39 = vperm.xlu0 %38, %v35
  %v40 = vpop.permute.xlu0 %39
  %43 = vset.pattern.permute.xlu0 0
  %44 = vperm.xlu0 %43, %v36
  %v45 = vpop.permute.xlu0 %44
  %v49 = vunpack.c.l.b16 %v17
  %v50 = vunpack.c.l.b16 %v18
  %v51 = vpack.c.b16 %v50, %v49
  %v69 = vunpack.c.l.b16 %v19
  %v70 = vunpack.c.l.b16 %v20
  %v71 = vunpack.c.l.b16 %v21
  %v72 = vunpack.c.l.b16 %v22
  %v73 = vunpack.c.l.b16 %v23
  %v74 = vunpack.c.l.b16 %v24
  %v75 = vunpack.c.l.b16 %v25
  %v76 = vunpack.c.l.b16 %v26
  %v77 = vunpack.c.l.b16 %v27
  %v78 = vunpack.c.l.b16 %v28
  %v79 = vunpack.c.l.b16 %v29
  %v80 = vunpack.c.l.b16 %v30
  %v81 = vunpack.c.l.b16 %v31
  %v82 = vunpack.c.l.b16 %v32
  %v83 = vunpack.c.l.b16 %v33
  %v84 = vunpack.c.l.b16 %v34
  %v85 = vpack.c.b16 %v70, %v69
  %v86 = vpack.c.b16 %v72, %v71
  %v87 = vpack.c.b16 %v74, %v73
  %v88 = vpack.c.b16 %v76, %v75
  %v89 = vpack.c.b16 %v78, %v77
  %v90 = vpack.c.b16 %v80, %v79
  %v91 = vpack.c.b16 %v82, %v81
  %v92 = vpack.c.b16 %v84, %v83
  %101 = vmatpush.bf16.msra.mxu0 %v92
  %102 = vmatpush.bf16.msra.mxu0 %v91
  %103 = vmatpush.bf16.msra.mxu0 %v90
  %104 = vmatpush.bf16.msra.mxu0 %v89
  %105 = vmatpush.bf16.msra.mxu0 %v88
  %106 = vmatpush.bf16.msra.mxu0 %v87
  %107 = vmatpush.bf16.msra.mxu0 %v86
  %108 = vmatpush.bf16.msra.mxu0 %v85
  %109 = vmatmul.bf16.gmra.mxu0 %v51
  %v110 = vpop.f32.mrf.mxu0
  %v111 = vadd.f32 %v40, %v110
  %v112 = vpop.f32.mrf.mxu0
  %v113 = vadd.f32 %v45, %v112
  %114 = vdwg.mxu0
  %vm115 = vcmp.gt.f32.partialorder %v111, 0.0
  %vm116 = vcmp.gt.f32.partialorder %v113, 0.0
  %v117 = vmul.f32 %v111, 0.2
  %v118 = vmul.f32 %v113, 0.2
  %v119 = vsel %vm115, %v111, %v117
  %v120 = vsel %vm116, %v113, %v118
  %vm121 = vcmask 261120
  %122 = vst.msk [vmem:[%s3] sm:$0xff] %vm121, %v119
  %123 = vst.msk [vmem:[%s3 + $0x8] sm:$0xff] %vm121, %v120
  %v124 = vsel %vm121, %v119, 0.0
  %125 = vadd.xlane.f32.xlu0 %v124
  %v126 = vpop.xlane.xlu0 %125
  %v127 = vsel %vm121, %v120, 0.0
  %128 = vadd.xlane.f32.xlu0 %v127
  %v129 = vpop.xlane.xlu0 %128
  %vm130 = vcmask 7168
  %131 = vst.msk [vmem:[%s4] sm:$0xff] %vm130, %v126
  %132 = vst.msk [vmem:[%s4 + $0x8] sm:$0xff] %vm130, %v129
  %v133 = vmul.f32 %v119, %v119
  %v134 = vmul.f32 %v120, %v120
  %v135 = vsel %vm121, %v133, 0.0
  %136 = vadd.xlane.f32.xlu0 %v135
  %v137 = vpop.xlane.xlu0 %136
  %v138 = vsel %vm121, %v134, 0.0
  %139 = vadd.xlane.f32.xlu0 %v138
  %v140 = vpop.xlane.xlu0 %139
  %141 = vst.msk [vmem:[%s5] sm:$0xff] %vm130, %v137
  %142 = vst.msk [vmem:[%s5 + $0x8] sm:$0xff] %vm130, %v140
  // Predicated region
  $region14: #{encoder_forward.10} parent=0 // pred_check
    _
  $region15: #{encoder_forward.10} parent=0 // pred_check_branch
    %144 = sbr.rel (0) target = $region17
  $region16: #{encoder_forward.10} parent=0 // pred_region
    _
  $region17: #{encoder_forward.10} parent=0 // pred_fallthru
    _
  // Predicated region
  $region18: #{encoder_forward.10} parent=0 // pred_check
    _
  $region19: #{encoder_forward.10} parent=0 // pred_check_branch
    %146 = sbr.rel (0) target = $region21
  $region20: #{encoder_forward.10} parent=0 // pred_region
    _
  $region21: #{encoder_forward.10} parent=0 // pred_fallthru
    _
  // Predicated region
  $region22: #{encoder_forward.10} parent=0 // pred_check
    _
  $region23: #{encoder_forward.10} parent=0 // pred_check_branch
    %148 = sbr.rel (0) target = $region25
  $region24: #{encoder_forward.10} parent=0 // pred_region
    _
  $region25: #{encoder_forward.10} parent=0 // pred_fallthru
    _
  // Predicated region
  $region26: #{encoder_forward.10} parent=0 // pred_check
    _
  $region27: #{encoder_forward.10} parent=0 // pred_check_branch
    %150 = sbr.rel (0) target = $region29
  $region28: #{encoder_forward.10} parent=0 // pred_region
    _
  $region29: #{encoder_forward.10} parent=0 // pred_fallthru
    _
  // Predicated region
  $region30: #{encoder_forward.10} parent=0 // pred_check
    _
  $region31: #{encoder_forward.10} parent=0 // pred_check_branch
    %152 = sbr.rel (0) target = $region33
  $region32: #{encoder_forward.10} parent=0 // pred_region
    _
  $region33: #{encoder_forward.10} parent=0 // pred_fallthru
    _
  // Predicated region
  $region34: #{encoder_forward.10} parent=0 // pred_check
    _
  $region35: #{encoder_forward.10} parent=0 // pred_check_branch
    %154 = sbr.rel (0) target = $region37
  $region36: #{encoder_forward.10} parent=0 // pred_region
    _
  $region37: #{encoder_forward.10} parent=0 // pred_fallthru
    _

// kernel: encoder_forward.11
$region0: #{encoder_forward.11}
  #allocation0 [shape = 'u32[]', space=smem, size = 0x4, offset = 0x4, fixed_abs, tag = 'smem constant byte address 0x4 - core index']
  #allocation1 [shape = 'u32[72,128]{1,0:T(1,128)}', space=vmem, size = 0x9000, scoped, tag = 'internal scratch']
  %s0 = inlined_call_operand.vmem [shape: f32[16,32], index: 0, kind: input, shape index: {}]
  %s1 = inlined_call_operand.vmem [shape: f32[2,16,1], index: 1, kind: input, shape index: {}]
  %s2 = inlined_call_operand.vmem [shape: f32[16,32], index: 2, kind: output, shape index: {}]
  %s3 = sld [smem:[#allocation0]]
  $region18: #{encoder_forward.11} parent=0
    _
  %s5 = ssub.s32 1, %s3
  %s6 = scalar_select 0, %s5, %s3
  // Predicated region
  $region2: #{encoder_forward.11} parent=0 // pred_check
    _
  $region3: #{encoder_forward.11} parent=0 // pred_check_branch
    %8 = sbr.rel (0) target = $region5
  $region4: #{encoder_forward.11} parent=0 // pred_region
    _
  $region5: #{encoder_forward.11} parent=0 // pred_fallthru
    _
  // Predicated region
  $region6: #{encoder_forward.11} parent=0 // pred_check
    _
  $region7: #{encoder_forward.11} parent=0 // pred_check_branch
    %10 = sbr.rel (0) target = $region9
  $region8: #{encoder_forward.11} parent=0 // pred_region
    _
  $region9: #{encoder_forward.11} parent=0 // pred_fallthru
    _
  %v11 = vld [vmem:[%s0] sm:$0xff]
  %v12 = vld [vmem:[%s0 + $0x8] sm:$0xff]
  %v13 = vld [vmem:[%s1] sm:$0xff]
  %v14 = vld [vmem:[%s1 + $0x8] sm:$0xff]
  %16 = vset.pattern.permute.xlu0 0
  %17 = vperm.xlu0 %16, %v13
  %v18 = vpop.permute.xlu0 %17
  %21 = vset.pattern.permute.xlu0 0
  %22 = vperm.xlu0 %21, %v14
  %v23 = vpop.permute.xlu0 %22
  %v25 = vmul.f32 %v11, %v18
  %v26 = vmul.f32 %v12, %v23
  %s27 = scalar_lea.vmem %s1, 16
  %v28 = vld [vmem:[%s27] sm:$0xff]
  %v29 = vld [vmem:[%s27 + $0x8] sm:$0xff]
  %31 = vset.pattern.permute.xlu0 0
  %32 = vperm.xlu0 %31, %v28
  %v33 = vpop.permute.xlu0 %32
  %36 = vset.pattern.permute.xlu0 0
  %37 = vperm.xlu0 %36, %v29
  %v38 = vpop.permute.xlu0 %37
  %v40 = vadd.f32 %v25, %v33
  %v41 = vadd.f32 %v26, %v38
  %vm42 = vcmask 261120
  %43 = vst.msk [vmem:[%s2] sm:$0xff] %vm42, %v40
  %44 = vst.msk [vmem:[%s2 + $0x8] sm:$0xff] %vm42, %v41
  // Predicated region
  $region10: #{encoder_forward.11} parent=0 // pred_check
    _
  $region11: #{encoder_forward.11} parent=0 // pred_check_branch
    %46 = sbr.rel (0) target = $region13
  $region12: #{encoder_forward.11} parent=0 // pred_region
    _
  $region13: #{encoder_forward.11} parent=0 // pred_fallthru
    _
  // Predicated region
  $region14: #{encoder_forward.11} parent=0 // pred_check
    _
  $region15: #{encoder_forward.11} parent=0 // pred_check_branch
    %48 = sbr.rel (0) target = $region17
  $region16: #{encoder_forward.11} parent=0 // pred_region
    _
  $region17: #{encoder_forward.11} parent=0 // pred_fallthru
    _

// kernel: encoder_forward.13
$region0: #{encoder_forward.13}
  #allocation0 [shape = 'u32[]', space=smem, size = 0x4, offset = 0x4, fixed_abs, tag = 'smem constant byte address 0x4 - core index']
  #allocation1 [shape = 'u32[72,128]{1,0:T(1,128)}', space=vmem, size = 0x9000, scoped, tag = 'internal scratch']
  %s0 = inlined_call_operand.vmem [shape: f32[32,8], index: 0, kind: input, shape index: {}]
  %s1 = inlined_call_operand.vmem [shape: f32[2,32,1], index: 1, kind: input, shape index: {}]
  %s2 = inlined_call_operand.vmem [shape: f32[32,8], index: 2, kind: output, shape index: {}]
  %s3 = sld [smem:[#allocation0]]
  $region18: #{encoder_forward.13} parent=0
    _
  %s5 = ssub.s32 1, %s3
  %s6 = scalar_select 0, %s5, %s3
  // Predicated region
  $region2: #{encoder_forward.13} parent=0 // pred_check
    _
  $region3: #{encoder_forward.13} parent=0 // pred_check_branch
    %8 = sbr.rel (0) target = $region5
  $region4: #{encoder_forward.13} parent=0 // pred_region
    _
  $region5: #{encoder_forward.13} parent=0 // pred_fallthru
    _
  // Predicated region
  $region6: #{encoder_forward.13} parent=0 // pred_check
    _
  $region7: #{encoder_forward.13} parent=0 // pred_check_branch
    %10 = sbr.rel (0) target = $region9
  $region8: #{encoder_forward.13} parent=0 // pred_region
    _
  $region9: #{encoder_forward.13} parent=0 // pred_fallthru
    _
  %v11 = vld [vmem:[%s0] sm:$0xff]
  %v12 = vld [vmem:[%s0 + $0x8] sm:$0xff]
  %v13 = vld [vmem:[%s0 + $0x10] sm:$0xff]
  %v14 = vld [vmem:[%s0 + $0x18] sm:$0xff]
  %v15 = vld [vmem:[%s1] sm:$0xff]
  %v16 = vld [vmem:[%s1 + $0x8] sm:$0xff]
  %v17 = vld [vmem:[%s1 + $0x10] sm:$0xff]
  %v18 = vld [vmem:[%s1 + $0x18] sm:$0xff]
  %20 = vset.pattern.permute.xlu0 0
  %21 = vperm.xlu0 %20, %v15
  %v22 = vpop.permute.xlu0 %21
  %25 = vset.pattern.permute.xlu0 0
  %26 = vperm.xlu0 %25, %v16
  %v27 = vpop.permute.xlu0 %26
  %30 = vset.pattern.permute.xlu0 0
  %31 = vperm.xlu0 %30, %v17
  %v32 = vpop.permute.xlu0 %31
  %35 = vset.pattern.permute.xlu0 0
  %36 = vperm.xlu0 %35, %v18
  %v37 = vpop.permute.xlu0 %36
  %v39 = vmul.f32 %v11, %v22
  %v40 = vmul.f32 %v12, %v27
  %v41 = vmul.f32 %v13, %v32
  %v42 = vmul.f32 %v14, %v37
  %s43 = scalar_lea.vmem %s1, 32
  %v44 = vld [vmem:[%s43] sm:$0xff]
  %v45 = vld [vmem:[%s43 + $0x8] sm:$0xff]
  %v46 = vld [vmem:[%s43 + $0x10] sm:$0xff]
  %v47 = vld [vmem:[%s43 + $0x18] sm:$0xff]
  %49 = vset.pattern.permute.xlu0 0
  %50 = vperm.xlu0 %49, %v44
  %v51 = vpop.permute.xlu0 %50
  %54 = vset.pattern.permute.xlu0 0
  %55 = vperm.xlu0 %54, %v45
  %v56 = vpop.permute.xlu0 %55
  %59 = vset.pattern.permute.xlu0 0
  %60 = vperm.xlu0 %59, %v46
  %v61 = vpop.permute.xlu0 %60
  %64 = vset.pattern.permute.xlu0 0
  %65 = vperm.xlu0 %64, %v47
  %v66 = vpop.permute.xlu0 %65
  %v68 = vadd.f32 %v39, %v51
  %v69 = vadd.f32 %v40, %v56
  %v70 = vadd.f32 %v41, %v61
  %v71 = vadd.f32 %v42, %v66
  %vm72 = vcmask 64512
  %73 = vst.msk [vmem:[%s2] sm:$0xff] %vm72, %v68
  %74 = vst.msk [vmem:[%s2 + $0x8] sm:$0xff] %vm72, %v69
  %75 = vst.msk [vmem:[%s2 + $0x10] sm:$0xff] %vm72, %v70
  %76 = vst.msk [vmem:[%s2 + $0x18] sm:$0xff] %vm72, %v71
  // Predicated region
  $region10: #{encoder_forward.13} parent=0 // pred_check
    _
  $region11: #{encoder_forward.13} parent=0 // pred_check_branch
    %78 = sbr.rel (0) target = $region13
  $region12: #{encoder_forward.13} parent=0 // pred_region
    _
  $region13: #{encoder_forward.13} parent=0 // pred_fallthru
    _
  // Predicated region
  $region14: #{encoder_forward.13} parent=0 // pred_check
    _
  $region15: #{encoder_forward.13} parent=0 // pred_check_branch
    %80 = sbr.rel (0) target = $region17
  $region16: #{encoder_forward.13} parent=0 // pred_region
    _
  $region17: #{encoder_forward.13} parent=0 // pred_fallthru
    _

// kernel: encoder_forward.12
$region0: #{encoder_forward.12}
  #allocation0 [shape = 'u32[]', space=smem, size = 0x4, offset = 0x4, fixed_abs, tag = 'smem constant byte address 0x4 - core index']
  #allocation1 [shape = 'u32[72,128]{1,0:T(1,128)}', space=vmem, size = 0x9000, scoped, tag = 'internal scratch']
  %s0 = inlined_call_operand.vmem [shape: bf16[256,8], index: 0, kind: input, shape index: {}]
  %s1 = inlined_call_operand.vmem [shape: bf16[32,256], index: 1, kind: input, shape index: {}]
  %s2 = inlined_call_operand.vmem [shape: f32[32,1], index: 2, kind: input, shape index: {}]
  %s3 = inlined_call_operand.vmem [shape: f32[32,8], index: 3, kind: output, shape index: {0}]
  %s4 = inlined_call_operand.vmem [shape: f32[1,32,1], index: 4, kind: output, shape index: {1}]
  %s5 = inlined_call_operand.vmem [shape: f32[1,32,1], index: 5, kind: output, shape index: {2}]
  %6 = xla_tuple %s3, %s4, %s5
  %s7 = sld [smem:[#allocation0]]
  $region38: #{encoder_forward.12} parent=0
    _
  %s9 = ssub.s32 1, %s7
  %s10 = scalar_select 0, %s9, %s7
  // Predicated region
  $region2: #{encoder_forward.12} parent=0 // pred_check
    _
  $region3: #{encoder_forward.12} parent=0 // pred_check_branch
    %12 = sbr.rel (0) target = $region5
  $region4: #{encoder_forward.12} parent=0 // pred_region
    _
  $region5: #{encoder_forward.12} parent=0 // pred_fallthru
    _
  // Predicated region
  $region6: #{encoder_forward.12} parent=0 // pred_check
    _
  $region7: #{encoder_forward.12} parent=0 // pred_check_branch
    %14 = sbr.rel (0) target = $region9
  $region8: #{encoder_forward.12} parent=0 // pred_region
    _
  $region9: #{encoder_forward.12} parent=0 // pred_fallthru
    _
  // Predicated region
  $region10: #{encoder_forward.12} parent=0 // pred_check
    _
  $region11: #{encoder_forward.12} parent=0 // pred_check_branch
    %16 = sbr.rel (0) target = $region13
  $region12: #{encoder_forward.12} parent=0 // pred_region
    _
  $region13: #{encoder_forward.12} parent=0 // pred_fallthru
    _
  %v17 = vld [vmem:[%s1] sm:$0xff]
  %v18 = vld [vmem:[%s1 + $0x8] sm:$0xff]
  %v19 = vld [vmem:[%s1 + $0x10] sm:$0xff]
  %v20 = vld [vmem:[%s1 + $0x18] sm:$0xff]
  %v21 = vld [vmem:[%s0] sm:$0xf]
  %v22 = vld [vmem:[%s0 + $0x4] sm:$0xf]
  %v23 = vld [vmem:[%s0 + $0x8] sm:$0xf]
  %v24 = vld [vmem:[%s0 + $0xc] sm:$0xf]
  %v25 = vld [vmem:[%s0 + $0x10] sm:$0xf]
  %v26 = vld [vmem:[%s0 + $0x14] sm:$0xf]
  %v27 = vld [vmem:[%s0 + $0x18] sm:$0xf]
  %v28 = vld [vmem:[%s0 + $0x1c] sm:$0xf]
  %v29 = vld [vmem:[%s0 + $0x20] sm:$0xf]
  %v30 = vld [vmem:[%s0 + $0x24] sm:$0xf]
  %v31 = vld [vmem:[%s0 + $0x28] sm:$0xf]
  %v32 = vld [vmem:[%s0 + $0x2c] sm:$0xf]
  %v33 = vld [vmem:[%s0 + $0x30] sm:$0xf]
  %v34 = vld [vmem:[%s0 + $0x34] sm:$0xf]
  %v35 = vld [vmem:[%s0 + $0x38] sm:$0xf]
  %v36 = vld [vmem:[%s0 + $0x3c] sm:$0xf]
  %v37 = vld [vmem:[%s0 + $0x40] sm:$0xf]
  %v38 = vld [vmem:[%s0 + $0x44] sm:$0xf]
  %v39 = vld [vmem:[%s0 + $0x48] sm:$0xf]
  %v40 = vld [vmem:[%s0 + $0x4c] sm:$0xf]
  %v41 = vld [vmem:[%s0 + $0x50] sm:$0xf]
  %v42 = vld [vmem:[%s0 + $0x54] sm:$0xf]
  %v43 = vld [vmem:[%s0 + $0x58] sm:$0xf]
  %v44 = vld [vmem:[%s0 + $0x5c] sm:$0xf]
  %v45 = vld [vmem:[%s0 + $0x60] sm:$0xf]
  %v46 = vld [vmem:[%s0 + $0x64] sm:$0xf]
  %v47 = vld [vmem:[%s0 + $0x68] sm:$0xf]
  %v48 = vld [vmem:[%s0 + $0x6c] sm:$0xf]
  %v49 = vld [vmem:[%s0 + $0x70] sm:$0xf]
  %v50 = vld [vmem:[%s0 + $0x74] sm:$0xf]
  %v51 = vld [vmem:[%s0 + $0x78] sm:$0xf]
  %v52 = vld [vmem:[%s0 + $0x7c] sm:$0xf]
  %v53 = vld [vmem:[%s2] sm:$0xff]
  %v54 = vld [vmem:[%s2 + $0x8] sm:$0xff]
  %v55 = vld [vmem:[%s2 + $0x10] sm:$0xff]
  %v56 = vld [vmem:[%s2 + $0x18] sm:$0xff]
  %58 = vset.pattern.permute.xlu0 0
  %59 = vperm.xlu0 %58, %v53
  %v60 = vpop.permute.xlu0 %59
  %63 = vset.pattern.permute.xlu0 0
  %64 = vperm.xlu0 %63, %v54
  %v65 = vpop.permute.xlu0 %64
  %68 = vset.pattern.permute.xlu0 0
  %69 = vperm.xlu0 %68, %v55
  %v70 = vpop.permute.xlu0 %69
  %73 = vset.pattern.permute.xlu0 0
  %74 = vperm.xlu0 %73, %v56
  %v75 = vpop.permute.xlu0 %74
  %v81 = vunpack.c.l.b16 %v17
  %v82 = vunpack.c.h.b16 %v17
  %v83 = vunpack.c.l.b16 %v18
  %v84 = vunpack.c.h.b16 %v18
  %v85 = vunpack.c.l.b16 %v19
  %v86 = vunpack.c.h.b16 %v19
  %v87 = vunpack.c.l.b16 %v20
  %v88 = vunpack.c.h.b16 %v20
  %v89 = vpack.c.b16 %v83, %v81
  %v90 = vpack.c.b16 %v84, %v82
  %v91 = vpack.c.b16 %v87, %v85
  %v92 = vpack.c.b16 %v88, %v86
  %v129 = vunpack.c.l.b16 %v21
  %v130 = vunpack.c.l.b16 %v22
  %v131 = vunpack.c.l.b16 %v23
  %v132 = vunpack.c.l.b16 %v24
  %v133 = vunpack.c.l.b16 %v25
  %v134 = vunpack.c.l.b16 %v26
  %v135 = vunpack.c.l.b16 %v27
  %v136 = vunpack.c.l.b16 %v28
  %v137 = vunpack.c.l.b16 %v29
  %v138 = vunpack.c.l.b16 %v30
  %v139 = vunpack.c.l.b16 %v31
  %v140 = vunpack.c.l.b16 %v32
  %v141 = vunpack.c.l.b16 %v33
  %v142 = vunpack.c.l.b16 %v34
  %v143 = vunpack.c.l.b16 %v35
  %v144 = vunpack.c.l.b16 %v36
  %v145 = vunpack.c.l.b16 %v37
  %v146 = vunpack.c.l.b16 %v38
  %v147 = vunpack.c.l.b16 %v39
  %v148 = vunpack.c.l.b16 %v40
  %v149 = vunpack.c.l.b16 %v41
  %v150 = vunpack.c.l.b16 %v42
  %v151 = vunpack.c.l.b16 %v43
  %v152 = vunpack.c.l.b16 %v44
  %v153 = vunpack.c.l.b16 %v45
  %v154 = vunpack.c.l.b16 %v46
  %v155 = vunpack.c.l.b16 %v47
  %v156 = vunpack.c.l.b16 %v48
  %v157 = vunpack.c.l.b16 %v49
  %v158 = vunpack.c.l.b16 %v50
  %v159 = vunpack.c.l.b16 %v51
  %v160 = vunpack.c.l.b16 %v52
  %v161 = vpack.c.b16 %v130, %v129
  %v162 = vpack.c.b16 %v132, %v131
  %v163 = vpack.c.b16 %v134, %v133
  %v164 = vpack.c.b16 %v136, %v135
  %v165 = vpack.c.b16 %v138, %v137
  %v166 = vpack.c.b16 %v140, %v139
  %v167 = vpack.c.b16 %v142, %v141
  %v168 = vpack.c.b16 %v144, %v143
  %v169 = vpack.c.b16 %v146, %v145
  %v170 = vpack.c.b16 %v148, %v147
  %v171 = vpack.c.b16 %v150, %v149
  %v172 = vpack.c.b16 %v152, %v151
  %v173 = vpack.c.b16 %v154, %v153
  %v174 = vpack.c.b16 %v156, %v155
  %v175 = vpack.c.b16 %v158, %v157
  %v176 = vpack.c.b16 %v160, %v159
  %193 = vmatpush.bf16.msra.mxu0 %v168
  %194 = vmatpush.bf16.msra.mxu0 %v167
  %195 = vmatpush.bf16.msra.mxu0 %v166
  %196 = vmatpush.bf16.msra.mxu0 %v165
  %197 = vmatpush.bf16.msra.mxu0 %v164
  %198 = vmatpush.bf16.msra.mxu0 %v163
  %199 = vmatpush.bf16.msra.mxu0 %v162
  %200 = vmatpush.bf16.msra.mxu0 %v161
  %201 = vmatmul.bf16.gmra.mxu0 %v89
  %v202 = vpop.f32.mrf.mxu0
  %v203 = vadd.f32 %v60, %v202
  %v204 = vpop.f32.mrf.mxu0
  %v205 = vadd.f32 %v65, %v204
  %206 = vmatmul.bf16.gmra.mxu0 %v91
  %v207 = vpop.f32.mrf.mxu0
  %v208 = vadd.f32 %v70, %v207
  %v209 = vpop.f32.mrf.mxu0
  %v210 = vadd.f32 %v75, %v209
  %211 = vdwg.mxu0
  %212 = vmatpush.bf16.msra.mxu0 %v176
  %213 = vmatpush.bf16.msra.mxu0 %v175
  %214 = vmatpush.bf16.msra.mxu0 %v174
  %215 = vmatpush.bf16.msra.mxu0 %v173
  %216 = vmatpush.bf16.msra.mxu0 %v172
  %217 = vmatpush.bf16.msra.mxu0 %v171
  %218 = vmatpush.bf16.msra.mxu0 %v170
  %219 = vmatpush.bf16.msra.mxu0 %v169
  %220 = vmatmul.bf16.gmra.mxu0 %v90
  %v221 = vpop.f32.mrf.mxu0
  %v222 = vadd.f32 %v203, %v221
  %v223 = vpop.f32.mrf.mxu0
  %v224 = vadd.f32 %v205, %v223
  %225 = vmatmul.bf16.gmra.mxu0 %v92
  %v226 = vpop.f32.mrf.mxu0
  %v227 = vadd.f32 %v208, %v226
  %v228 = vpop.f32.mrf.mxu0
  %v229 = vadd.f32 %v210, %v228
  %230 = vdwg.mxu0
  %vm231 = vcmp.gt.f32.partialorder %v222, 0.0
  %vm232 = vcmp.gt.f32.partialorder %v224, 0.0
  %vm233 = vcmp.gt.f32.partialorder %v227, 0.0
  %vm234 = vcmp.gt.f32.partialorder %v229, 0.0
  %v235 = vmul.f32 %v222, 0.2
  %v236 = vmul.f32 %v224, 0.2
  %v237 = vmul.f32 %v227, 0.2
  %v238 = vmul.f32 %v229, 0.2
  %v239 = vsel %vm231, %v222, %v235
  %v240 = vsel %vm232, %v224, %v236
  %v241 = vsel %vm233, %v227, %v237
  %v242 = vsel %vm234, %v229, %v238
  %vm243 = vcmask 64512
  %244 = vst.msk [vmem:[%s3] sm:$0xff] %vm243, %v239
  %245 = vst.msk [vmem:[%s3 + $0x8] sm:$0xff] %vm243, %v240
  %246 = vst.msk [vmem:[%s3 + $0x10] sm:$0xff] %vm243, %v241
  %247 = vst.msk [vmem:[%s3 + $0x18] sm:$0xff] %vm243, %v242
  %v248 = vsel %vm243, %v239, 0.0
  %249 = vadd.xlane.f32.xlu0 %v248
  %v250 = vpop.xlane.xlu0 %249
  %v251 = vsel %vm243, %v240, 0.0
  %252 = vadd.xlane.f32.xlu0 %v251
  %v253 = vpop.xlane.xlu0 %252
  %v254 = vsel %vm243, %v241, 0.0
  %255 = vadd.xlane.f32.xlu0 %v254
  %v256 = vpop.xlane.xlu0 %255
  %v257 = vsel %vm243, %v242, 0.0
  %258 = vadd.xlane.f32.xlu0 %v257
  %v259 = vpop.xlane.xlu0 %258
  %vm260 = vcmask 7168
  %261 = vst.msk [vmem:[%s4] sm:$0xff] %vm260, %v250
  %262 = vst.msk [vmem:[%s4 + $0x8] sm:$0xff] %vm260, %v253
  %263 = vst.msk [vmem:[%s4 + $0x10] sm:$0xff] %vm260, %v256
  %264 = vst.msk [vmem:[%s4 + $0x18] sm:$0xff] %vm260, %v259
  %v265 = vmul.f32 %v239, %v239
  %v266 = vmul.f32 %v240, %v240
  %v267 = vmul.f32 %v241, %v241
  %v268 = vmul.f32 %v242, %v242
  %v269 = vsel %vm243, %v265, 0.0
  %270 = vadd.xlane.f32.xlu0 %v269
  %v271 = vpop.xlane.xlu0 %270
  %v272 = vsel %vm243, %v266, 0.0
  %273 = vadd.xlane.f32.xlu0 %v272
  %v274 = vpop.xlane.xlu0 %273
  %v275 = vsel %vm243, %v267, 0.0
  %276 = vadd.xlane.f32.xlu0 %v275
  %v277 = vpop.xlane.xlu0 %276
  %v278 = vsel %vm243, %v268, 0.0
  %279 = vadd.xlane.f32.xlu0 %v278
  %v280 = vpop.xlane.xlu0 %279
  %281 = vst.msk [vmem:[%s5] sm:$0xff] %vm260, %v271
  %282 = vst.msk [vmem:[%s5 + $0x8] sm:$0xff] %vm260, %v274
  %283 = vst.msk [vmem:[%s5 + $0x10] sm:$0xff] %vm260, %v277
  %284 = vst.msk [vmem:[%s5 + $0x18] sm:$0xff] %vm260, %v280
  // Predicated region
  $region14: #{encoder_forward.12} parent=0 // pred_check
    _
  $region15: #{encoder_forward.12} parent=0 // pred_check_branch
    %286 = sbr.rel (0) target = $region17
  $region16: #{encoder_forward.12} parent=0 // pred_region
    _
  $region17: #{encoder_forward.12} parent=0 // pred_fallthru
    _
  // Predicated region
  $region18: #{encoder_forward.12} parent=0 // pred_check
    _
  $region19: #{encoder_forward.12} parent=0 // pred_check_branch
    %288 = sbr.rel (0) target = $region21
  $region20: #{encoder_forward.12} parent=0 // pred_region
    _
  $region21: #{encoder_forward.12} parent=0 // pred_fallthru
    _
  // Predicated region
  $region22: #{encoder_forward.12} parent=0 // pred_check
    _
  $region23: #{encoder_forward.12} parent=0 // pred_check_branch
    %290 = sbr.rel (0) target = $region25
  $region24: #{encoder_forward.12} parent=0 // pred_region
    _
  $region25: #{encoder_forward.12} parent=0 // pred_fallthru
    _
  // Predicated region
  $region26: #{encoder_forward.12} parent=0 // pred_check
    _
  $region27: #{encoder_forward.12} parent=0 // pred_check_branch
    %292 = sbr.rel (0) target = $region29
  $region28: #{encoder_forward.12} parent=0 // pred_region
    _
  $region29: #{encoder_forward.12} parent=0 // pred_fallthru
    _
  // Predicated region
  $region30: #{encoder_forward.12} parent=0 // pred_check
    _
  $region31: #{encoder_forward.12} parent=0 // pred_check_branch
    %294 = sbr.rel (0) target = $region33
  $region32: #{encoder_forward.12} parent=0 // pred_region
    _
  $region33: #{encoder_forward.12} parent=0 // pred_fallthru
    _
  // Predicated region
  $region34: #{encoder_forward.12} parent=0 // pred_check
    _
  $region35: #{encoder_forward.12} parent=0 // pred_check_branch
    %296 = sbr.rel (0) target = $region37
  $region36: #{encoder_forward.12} parent=0 // pred_region
    _
  $region37: #{encoder_forward.12} parent=0 // pred_fallthru
    _

// kernel: encoder_forward.15
$region0: #{encoder_forward.15}
  #allocation0 [shape = 'u32[]', space=smem, size = 0x4, offset = 0x4, fixed_abs, tag = 'smem constant byte address 0x4 - core index']
  #allocation1 [shape = 'u32[72,128]{1,0:T(1,128)}', space=vmem, size = 0x9000, scoped, tag = 'internal scratch']
  %s0 = inlined_call_operand.vmem [shape: f32[64,2], index: 0, kind: input, shape index: {}]
  %s1 = inlined_call_operand.vmem [shape: f32[2,64,1], index: 1, kind: input, shape index: {}]
  %s2 = inlined_call_operand.vmem [shape: f32[64,2], index: 2, kind: output, shape index: {}]
  %s3 = sld [smem:[#allocation0]]
  $region18: #{encoder_forward.15} parent=0
    _
  %s5 = ssub.s32 1, %s3
  %s6 = scalar_select 0, %s5, %s3
  // Predicated region
  $region2: #{encoder_forward.15} parent=0 // pred_check
    _
  $region3: #{encoder_forward.15} parent=0 // pred_check_branch
    %8 = sbr.rel (0) target = $region5
  $region4: #{encoder_forward.15} parent=0 // pred_region
    _
  $region5: #{encoder_forward.15} parent=0 // pred_fallthru
    _
  // Predicated region
  $region6: #{encoder_forward.15} parent=0 // pred_check
    _
  $region7: #{encoder_forward.15} parent=0 // pred_check_branch
    %10 = sbr.rel (0) target = $region9
  $region8: #{encoder_forward.15} parent=0 // pred_region
    _
  $region9: #{encoder_forward.15} parent=0 // pred_fallthru
    _
  %v11 = vld [vmem:[%s0] sm:$0xff]
  %v12 = vld [vmem:[%s0 + $0x8] sm:$0xff]
  %v13 = vld [vmem:[%s0 + $0x10] sm:$0xff]
  %v14 = vld [vmem:[%s0 + $0x18] sm:$0xff]
  %v15 = vld [vmem:[%s0 + $0x20] sm:$0xff]
  %v16 = vld [vmem:[%s0 + $0x28] sm:$0xff]
  %v17 = vld [vmem:[%s0 + $0x30] sm:$0xff]
  %v18 = vld [vmem:[%s0 + $0x38] sm:$0xff]
  %v19 = vld [vmem:[%s1] sm:$0xff]
  %v20 = vld [vmem:[%s1 + $0x8] sm:$0xff]
  %v21 = vld [vmem:[%s1 + $0x10] sm:$0xff]
  %v22 = vld [vmem:[%s1 + $0x18] sm:$0xff]
  %v23 = vld [vmem:[%s1 + $0x20] sm:$0xff]
  %v24 = vld [vmem:[%s1 + $0x28] sm:$0xff]
  %v25 = vld [vmem:[%s1 + $0x30] sm:$0xff]
  %v26 = vld [vmem:[%s1 + $0x38] sm:$0xff]
  %28 = vset.pattern.permute.xlu0 0
  %29 = vperm.xlu0 %28, %v19
  %v30 = vpop.permute.xlu0 %29
  %33 = vset.pattern.permute.xlu0 0
  %34 = vperm.xlu0 %33, %v20
  %v35 = vpop.permute.xlu0 %34
  %38 = vset.pattern.permute.xlu0 0
  %39 = vperm.xlu0 %38, %v21
  %v40 = vpop.permute.xlu0 %39
  %43 = vset.pattern.permute.xlu0 0
  %44 = vperm.xlu0 %43, %v22
  %v45 = vpop.permute.xlu0 %44
  %48 = vset.pattern.permute.xlu0 0
  %49 = vperm.xlu0 %48, %v23
  %v50 = vpop.permute.xlu0 %49
  %53 = vset.pattern.permute.xlu0 0
  %54 = vperm.xlu0 %53, %v24
  %v55 = vpop.permute.xlu0 %54
  %58 = vset.pattern.permute.xlu0 0
  %59 = vperm.xlu0 %58, %v25
  %v60 = vpop.permute.xlu0 %59
  %63 = vset.pattern.permute.xlu0 0
  %64 = vperm.xlu0 %63, %v26
  %v65 = vpop.permute.xlu0 %64
  %v67 = vmul.f32 %v11, %v30
  %v68 = vmul.f32 %v12, %v35
  %v69 = vmul.f32 %v13, %v40
  %v70 = vmul.f32 %v14, %v45
  %v71 = vmul.f32 %v15, %v50
  %v72 = vmul.f32 %v16, %v55
  %v73 = vmul.f32 %v17, %v60
  %v74 = vmul.f32 %v18, %v65
  %s75 = scalar_lea.vmem %s1, 64
  %v76 = vld [vmem:[%s75] sm:$0xff]
  %v77 = vld [vmem:[%s75 + $0x8] sm:$0xff]
  %v78 = vld [vmem:[%s75 + $0x10] sm:$0xff]
  %v79 = vld [vmem:[%s75 + $0x18] sm:$0xff]
  %v80 = vld [vmem:[%s75 + $0x20] sm:$0xff]
  %v81 = vld [vmem:[%s75 + $0x28] sm:$0xff]
  %v82 = vld [vmem:[%s75 + $0x30] sm:$0xff]
  %v83 = vld [vmem:[%s75 + $0x38] sm:$0xff]
  %85 = vset.pattern.permute.xlu0 0
  %86 = vperm.xlu0 %85, %v76
  %v87 = vpop.permute.xlu0 %86
  %90 = vset.pattern.permute.xlu0 0
  %91 = vperm.xlu0 %90, %v77
  %v92 = vpop.permute.xlu0 %91
  %95 = vset.pattern.permute.xlu0 0
  %96 = vperm.xlu0 %95, %v78
  %v97 = vpop.permute.xlu0 %96
  %100 = vset.pattern.permute.xlu0 0
  %101 = vperm.xlu0 %100, %v79
  %v102 = vpop.permute.xlu0 %101
  %105 = vset.pattern.permute.xlu0 0
  %106 = vperm.xlu0 %105, %v80
  %v107 = vpop.permute.xlu0 %106
  %110 = vset.pattern.permute.xlu0 0
  %111 = vperm.xlu0 %110, %v81
  %v112 = vpop.permute.xlu0 %111
  %115 = vset.pattern.permute.xlu0 0
  %116 = vperm.xlu0 %115, %v82
  %v117 = vpop.permute.xlu0 %116
  %120 = vset.pattern.permute.xlu0 0
  %121 = vperm.xlu0 %120, %v83
  %v122 = vpop.permute.xlu0 %121
  %v124 = vadd.f32 %v67, %v87
  %v125 = vadd.f32 %v68, %v92
  %v126 = vadd.f32 %v69, %v97
  %v127 = vadd.f32 %v70, %v102
  %v128 = vadd.f32 %v71, %v107
  %v129 = vadd.f32 %v72, %v112
  %v130 = vadd.f32 %v73, %v117
  %v131 = vadd.f32 %v74, %v122
  %vm132 = vcmask 15360
  %133 = vst.msk [vmem:[%s2] sm:$0xff] %vm132, %v124
  %134 = vst.msk [vmem:[%s2 + $0x8] sm:$0xff] %vm132, %v125
  %135 = vst.msk [vmem:[%s2 + $0x10] sm:$0xff] %vm132, %v126
  %136 = vst.msk [vmem:[%s2 + $0x18] sm:$0xff] %vm132, %v127
  %137 = vst.msk [vmem:[%s2 + $0x20] sm:$0xff] %vm132, %v128
  %138 = vst.msk [vmem:[%s2 + $0x28] sm:$0xff] %vm132, %v129
  %139 = vst.msk [vmem:[%s2 + $0x30] sm:$0xff] %vm132, %v130
  %140 = vst.msk [vmem:[%s2 + $0x38] sm:$0xff] %vm132, %v131
  // Predicated region
  $region10: #{encoder_forward.15} parent=0 // pred_check
    _
  $region11: #{encoder_forward.15} parent=0 // pred_check_branch
    %142 = sbr.rel (0) target = $region13
  $region12: #{encoder_forward.15} parent=0 // pred_region
    _
  $region13: #{encoder_forward.15} parent=0 // pred_fallthru
    _
  // Predicated region
  $region14: #{encoder_forward.15} parent=0 // pred_check
    _
  $region15: #{encoder_forward.15} parent=0 // pred_check_branch
    %144 = sbr.rel (0) target = $region17
  $region16: #{encoder_forward.15} parent=0 // pred_region
    _
  $region17: #{encoder_forward.15} parent=0 // pred_fallthru
    _

// kernel: encoder_forward.14
$region0: #{encoder_forward.14}
  #allocation0 [shape = 'u32[]', space=smem, size = 0x4, offset = 0x4, fixed_abs, tag = 'smem constant byte address 0x4 - core index']
  #allocation1 [shape = 'u32[72,128]{1,0:T(1,128)}', space=vmem, size = 0x9000, scoped, tag = 'internal scratch']
  %s0 = inlined_call_operand.vmem [shape: bf16[512,2], index: 0, kind: input, shape index: {}]
  %s1 = inlined_call_operand.vmem [shape: bf16[64,512], index: 1, kind: input, shape index: {}]
  %s2 = inlined_call_operand.vmem [shape: f32[64,1], index: 2, kind: input, shape index: {}]
  %s3 = inlined_call_operand.vmem [shape: f32[64,2], index: 3, kind: output, shape index: {0}]
  %s4 = inlined_call_operand.vmem [shape: f32[1,64,1], index: 4, kind: output, shape index: {1}]
  %s5 = inlined_call_operand.vmem [shape: f32[1,64,1], index: 5, kind: output, shape index: {2}]
  %6 = xla_tuple %s3, %s4, %s5
  %s7 = sld [smem:[#allocation0]]
  $region38: #{encoder_forward.14} parent=0
    _
  %s9 = ssub.s32 1, %s7
  %s10 = scalar_select 0, %s9, %s7
  // Predicated region
  $region2: #{encoder_forward.14} parent=0 // pred_check
    _
  $region3: #{encoder_forward.14} parent=0 // pred_check_branch
    %12 = sbr.rel (0) target = $region5
  $region4: #{encoder_forward.14} parent=0 // pred_region
    _
  $region5: #{encoder_forward.14} parent=0 // pred_fallthru
    _
  // Predicated region
  $region6: #{encoder_forward.14} parent=0 // pred_check
    _
  $region7: #{encoder_forward.14} parent=0 // pred_check_branch
    %14 = sbr.rel (0) target = $region9
  $region8: #{encoder_forward.14} parent=0 // pred_region
    _
  $region9: #{encoder_forward.14} parent=0 // pred_fallthru
    _
  // Predicated region
  $region10: #{encoder_forward.14} parent=0 // pred_check
    _
  $region11: #{encoder_forward.14} parent=0 // pred_check_branch
    %16 = sbr.rel (0) target = $region13
  $region12: #{encoder_forward.14} parent=0 // pred_region
    _
  $region13: #{encoder_forward.14} parent=0 // pred_fallthru
    _
  %v17 = vld [vmem:[%s1] sm:$0xff]
  %v18 = vld [vmem:[%s1 + $0x8] sm:$0xff]
  %v19 = vld [vmem:[%s1 + $0x10] sm:$0xff]
  %v20 = vld [vmem:[%s1 + $0x18] sm:$0xff]
  %v21 = vld [vmem:[%s1 + $0x20] sm:$0xff]
  %v22 = vld [vmem:[%s1 + $0x28] sm:$0xff]
  %v23 = vld [vmem:[%s1 + $0x30] sm:$0xff]
  %v24 = vld [vmem:[%s1 + $0x38] sm:$0xff]
  %v25 = vld [vmem:[%s1 + $0x40] sm:$0xff]
  %v26 = vld [vmem:[%s1 + $0x48] sm:$0xff]
  %v27 = vld [vmem:[%s1 + $0x50] sm:$0xff]
  %v28 = vld [vmem:[%s1 + $0x58] sm:$0xff]
  %v29 = vld [vmem:[%s1 + $0x60] sm:$0xff]
  %v30 = vld [vmem:[%s1 + $0x68] sm:$0xff]
  %v31 = vld [vmem:[%s1 + $0x70] sm:$0xff]
  %v32 = vld [vmem:[%s1 + $0x78] sm:$0xff]
  %v33 = vld [vmem:[%s0] sm:$0xf]
  %v34 = vld [vmem:[%s0 + $0x4] sm:$0xf]
  %v35 = vld [vmem:[%s0 + $0x8] sm:$0xf]
  %v36 = vld [vmem:[%s0 + $0xc] sm:$0xf]
  %v37 = vld [vmem:[%s0 + $0x10] sm:$0xf]
  %v38 = vld [vmem:[%s0 + $0x14] sm:$0xf]
  %v39 = vld [vmem:[%s0 + $0x18] sm:$0xf]
  %v40 = vld [vmem:[%s0 + $0x1c] sm:$0xf]
  %v41 = vld [vmem:[%s0 + $0x20] sm:$0xf]
  %v42 = vld [vmem:[%s0 + $0x24] sm:$0xf]
  %v43 = vld [vmem:[%s0 + $0x28] sm:$0xf]
  %v44 = vld [vmem:[%s0 + $0x2c] sm:$0xf]
  %v45 = vld [vmem:[%s0 + $0x30] sm:$0xf]
  %v46 = vld [vmem:[%s0 + $0x34] sm:$0xf]
  %v47 = vld [vmem:[%s0 + $0x38] sm:$0xf]
  %v48 = vld [vmem:[%s0 + $0x3c] sm:$0xf]
  %v49 = vld [vmem:[%s0 + $0x40] sm:$0xf]
  %v50 = vld [vmem:[%s0 + $0x44] sm:$0xf]
  %v51 = vld [vmem:[%s0 + $0x48] sm:$0xf]
  %v52 = vld [vmem:[%s0 + $0x4c] sm:$0xf]
  %v53 = vld [vmem:[%s0 + $0x50] sm:$0xf]
  %v54 = vld [vmem:[%s0 + $0x54] sm:$0xf]
  %v55 = vld [vmem:[%s0 + $0x58] sm:$0xf]
  %v56 = vld [vmem:[%s0 + $0x5c] sm:$0xf]
  %v57 = vld [vmem:[%s0 + $0x60] sm:$0xf]
  %v58 = vld [vmem:[%s0 + $0x64] sm:$0xf]
  %v59 = vld [vmem:[%s0 + $0x68] sm:$0xf]
  %v60 = vld [vmem:[%s0 + $0x6c] sm:$0xf]
  %v61 = vld [vmem:[%s0 + $0x70] sm:$0xf]
  %v62 = vld [vmem:[%s0 + $0x74] sm:$0xf]
  %v63 = vld [vmem:[%s0 + $0x78] sm:$0xf]
  %v64 = vld [vmem:[%s0 + $0x7c] sm:$0xf]
  %v65 = vld [vmem:[%s0 + $0x80] sm:$0xf]
  %v66 = vld [vmem:[%s0 + $0x84] sm:$0xf]
  %v67 = vld [vmem:[%s0 + $0x88] sm:$0xf]
  %v68 = vld [vmem:[%s0 + $0x8c] sm:$0xf]
  %v69 = vld [vmem:[%s0 + $0x90] sm:$0xf]
  %v70 = vld [vmem:[%s0 + $0x94] sm:$0xf]
  %v71 = vld [vmem:[%s0 + $0x98] sm:$0xf]
  %v72 = vld [vmem:[%s0 + $0x9c] sm:$0xf]
  %v73 = vld [vmem:[%s0 + $0xa0] sm:$0xf]
  %v74 = vld [vmem:[%s0 + $0xa4] sm:$0xf]
  %v75 = vld [vmem:[%s0 + $0xa8] sm:$0xf]
  %v76 = vld [vmem:[%s0 + $0xac] sm:$0xf]
  %v77 = vld [vmem:[%s0 + $0xb0] sm:$0xf]
  %v78 = vld [vmem:[%s0 + $0xb4] sm:$0xf]
  %v79 = vld [vmem:[%s0 + $0xb8] sm:$0xf]
  %v80 = vld [vmem:[%s0 + $0xbc] sm:$0xf]
  %v81 = vld [vmem:[%s0 + $0xc0] sm:$0xf]
  %v82 = vld [vmem:[%s0 + $0xc4] sm:$0xf]
  %v83 = vld [vmem:[%s0 + $0xc8] sm:$0xf]
  %v84 = vld [vmem:[%s0 + $0xcc] sm:$0xf]
  %v85 = vld [vmem:[%s0 + $0xd0] sm:$0xf]
  %v86 = vld [vmem:[%s0 + $0xd4] sm:$0xf]
  %v87 = vld [vmem:[%s0 + $0xd8] sm:$0xf]
  %v88 = vld [vmem:[%s0 + $0xdc] sm:$0xf]
  %v89 = vld [vmem:[%s0 + $0xe0] sm:$0xf]
  %v90 = vld [vmem:[%s0 + $0xe4] sm:$0xf]
  %v91 = vld [vmem:[%s0 + $0xe8] sm:$0xf]
  %v92 = vld [vmem:[%s0 + $0xec] sm:$0xf]
  %v93 = vld [vmem:[%s0 + $0xf0] sm:$0xf]
  %v94 = vld [vmem:[%s0 + $0xf4] sm:$0xf]
  %v95 = vld [vmem:[%s0 + $0xf8] sm:$0xf]
  %v96 = vld [vmem:[%s0 + $0xfc] sm:$0xf]
  %v97 = vld [vmem:[%s2] sm:$0xff]
  %v98 = vld [vmem:[%s2 + $0x8] sm:$0xff]
  %v99 = vld [vmem:[%s2 + $0x10] sm:$0xff]
  %v100 = vld [vmem:[%s2 + $0x18] sm:$0xff]
  %v101 = vld [vmem:[%s2 + $0x20] sm:$0xff]
  %v102 = vld [vmem:[%s2 + $0x28] sm:$0xff]
  %v103 = vld [vmem:[%s2 + $0x30] sm:$0xff]
  %v104 = vld [vmem:[%s2 + $0x38] sm:$0xff]
  %106 = vset.pattern.permute.xlu0 0
  %107 = vperm.xlu0 %106, %v97
  %v108 = vpop.permute.xlu0 %107
  %111 = vset.pattern.permute.xlu0 0
  %112 = vperm.xlu0 %111, %v98
  %v113 = vpop.permute.xlu0 %112
  %116 = vset.pattern.permute.xlu0 0
  %117 = vperm.xlu0 %116, %v99
  %v118 = vpop.permute.xlu0 %117
  %121 = vset.pattern.permute.xlu0 0
  %122 = vperm.xlu0 %121, %v100
  %v123 = vpop.permute.xlu0 %122
  %126 = vset.pattern.permute.xlu0 0
  %127 = vperm.xlu0 %126, %v101
  %v128 = vpop.permute.xlu0 %127
  %131 = vset.pattern.permute.xlu0 0
  %132 = vperm.xlu0 %131, %v102
  %v133 = vpop.permute.xlu0 %132
  %136 = vset.pattern.permute.xlu0 0
  %137 = vperm.xlu0 %136, %v103
  %v138 = vpop.permute.xlu0 %137
  %141 = vset.pattern.permute.xlu0 0
  %142 = vperm.xlu0 %141, %v104
  %v143 = vpop.permute.xlu0 %142
  %v161 = vunpack.c.l.b16 %v17
  %v162 = vunpack.c.h.b16 %v17
  %v163 = vunpack.c.l.b16 %v18
  %v164 = vunpack.c.h.b16 %v18
  %v165 = vunpack.c.l.b16 %v19
  %v166 = vunpack.c.h.b16 %v19
  %v167 = vunpack.c.l.b16 %v20
  %v168 = vunpack.c.h.b16 %v20
  %v169 = vunpack.c.l.b16 %v21
  %v170 = vunpack.c.h.b16 %v21
  %v171 = vunpack.c.l.b16 %v22
  %v172 = vunpack.c.h.b16 %v22
  %v173 = vunpack.c.l.b16 %v23
  %v174 = vunpack.c.h.b16 %v23
  %v175 = vunpack.c.l.b16 %v24
  %v176 = vunpack.c.h.b16 %v24
  %v177 = vunpack.c.l.b16 %v25
  %v178 = vunpack.c.h.b16 %v25
  %v179 = vunpack.c.l.b16 %v26
  %v180 = vunpack.c.h.b16 %v26
  %v181 = vunpack.c.l.b16 %v27
  %v182 = vunpack.c.h.b16 %v27
  %v183 = vunpack.c.l.b16 %v28
  %v184 = vunpack.c.h.b16 %v28
  %v185 = vunpack.c.l.b16 %v29
  %v186 = vunpack.c.h.b16 %v29
  %v187 = vunpack.c.l.b16 %v30
  %v188 = vunpack.c.h.b16 %v30
  %v189 = vunpack.c.l.b16 %v31
  %v190 = vunpack.c.h.b16 %v31
  %v191 = vunpack.c.l.b16 %v32
  %v192 = vunpack.c.h.b16 %v32
  %v193 = vpack.c.b16 %v165, %v161
  %v194 = vpack.c.b16 %v166, %v162
  %v195 = vpack.c.b16 %v167, %v163
  %v196 = vpack.c.b16 %v168, %v164
  %v197 = vpack.c.b16 %v173, %v169
  %v198 = vpack.c.b16 %v174, %v170
  %v199 = vpack.c.b16 %v175, %v171
  %v200 = vpack.c.b16 %v176, %v172
  %v201 = vpack.c.b16 %v181, %v177
  %v202 = vpack.c.b16 %v182, %v178
  %v203 = vpack.c.b16 %v183, %v179
  %v204 = vpack.c.b16 %v184, %v180
  %v205 = vpack.c.b16 %v189, %v185
  %v206 = vpack.c.b16 %v190, %v186
  %v207 = vpack.c.b16 %v191, %v187
  %v208 = vpack.c.b16 %v192, %v188
  %v289 = vunpack.c.l.b16 %v33
  %v290 = vunpack.c.l.b16 %v34
  %v291 = vunpack.c.l.b16 %v35
  %v292 = vunpack.c.l.b16 %v36
  %v293 = vunpack.c.l.b16 %v37
  %v294 = vunpack.c.l.b16 %v38
  %v295 = vunpack.c.l.b16 %v39
  %v296 = vunpack.c.l.b16 %v40
  %v297 = vunpack.c.l.b16 %v41
  %v298 = vunpack.c.l.b16 %v42
  %v299 = vunpack.c.l.b16 %v43
  %v300 = vunpack.c.l.b16 %v44
  %v301 = vunpack.c.l.b16 %v45
  %v302 = vunpack.c.l.b16 %v46
  %v303 = vunpack.c.l.b16 %v47
  %v304 = vunpack.c.l.b16 %v48
  %v305 = vunpack.c.l.b16 %v49
  %v306 = vunpack.c.l.b16 %v50
  %v307 = vunpack.c.l.b16 %v51
  %v308 = vunpack.c.l.b16 %v52
  %v309 = vunpack.c.l.b16 %v53
  %v310 = vunpack.c.l.b16 %v54
  %v311 = vunpack.c.l.b16 %v55
  %v312 = vunpack.c.l.b16 %v56
  %v313 = vunpack.c.l.b16 %v57
  %v314 = vunpack.c.l.b16 %v58
  %v315 = vunpack.c.l.b16 %v59
  %v316 = vunpack.c.l.b16 %v60
  %v317 = vunpack.c.l.b16 %v61
  %v318 = vunpack.c.l.b16 %v62
  %v319 = vunpack.c.l.b16 %v63
  %v320 = vunpack.c.l.b16 %v64
  %v321 = vunpack.c.l.b16 %v65
  %v322 = vunpack.c.l.b16 %v66
  %v323 = vunpack.c.l.b16 %v67
  %v324 = vunpack.c.l.b16 %v68
  %v325 = vunpack.c.l.b16 %v69
  %v326 = vunpack.c.l.b16 %v70
  %v327 = vunpack.c.l.b16 %v71
  %v328 = vunpack.c.l.b16 %v72
  %v329 = vunpack.c.l.b16 %v73
  %v330 = vunpack.c.l.b16 %v74
  %v331 = vunpack.c.l.b16 %v75
  %v332 = vunpack.c.l.b16 %v76
  %v333 = vunpack.c.l.b16 %v77
  %v334 = vunpack.c.l.b16 %v78
  %v335 = vunpack.c.l.b16 %v79
  %v336 = vunpack.c.l.b16 %v80
  %v337 = vunpack.c.l.b16 %v81
  %v338 = vunpack.c.l.b16 %v82
  %v339 = vunpack.c.l.b16 %v83
  %v340 = vunpack.c.l.b16 %v84
  %v341 = vunpack.c.l.b16 %v85
  %v342 = vunpack.c.l.b16 %v86
  %v343 = vunpack.c.l.b16 %v87
  %v344 = vunpack.c.l.b16 %v88
  %v345 = vunpack.c.l.b16 %v89
  %v346 = vunpack.c.l.b16 %v90
  %v347 = vunpack.c.l.b16 %v91
  %v348 = vunpack.c.l.b16 %v92
  %v349 = vunpack.c.l.b16 %v93
  %v350 = vunpack.c.l.b16 %v94
  %v351 = vunpack.c.l.b16 %v95
  %v352 = vunpack.c.l.b16 %v96
  %v353 = vpack.c.b16 %v290, %v289
  %v354 = vpack.c.b16 %v292, %v291
  %v355 = vpack.c.b16 %v294, %v293
  %v356 = vpack.c.b16 %v296, %v295
  %v357 = vpack.c.b16 %v298, %v297
  %v358 = vpack.c.b16 %v300, %v299
  %v359 = vpack.c.b16 %v302, %v301
  %v360 = vpack.c.b16 %v304, %v303
  %v361 = vpack.c.b16 %v306, %v305
  %v362 = vpack.c.b16 %v308, %v307
  %v363 = vpack.c.b16 %v310, %v309
  %v364 = vpack.c.b16 %v312, %v311
  %v365 = vpack.c.b16 %v314, %v313
  %v366 = vpack.c.b16 %v316, %v315
  %v367 = vpack.c.b16 %v318, %v317
  %v368 = vpack.c.b16 %v320, %v319
  %v369 = vpack.c.b16 %v322, %v321
  %v370 = vpack.c.b16 %v324, %v323
  %v371 = vpack.c.b16 %v326, %v325
  %v372 = vpack.c.b16 %v328, %v327
  %v373 = vpack.c.b16 %v330, %v329
  %v374 = vpack.c.b16 %v332, %v331
  %v375 = vpack.c.b16 %v334, %v333
  %v376 = vpack.c.b16 %v336, %v335
  %v377 = vpack.c.b16 %v338, %v337
  %v378 = vpack.c.b16 %v340, %v339
  %v379 = vpack.c.b16 %v342, %v341
  %v380 = vpack.c.b16 %v344, %v343
  %v381 = vpack.c.b16 %v346, %v345
  %v382 = vpack.c.b16 %v348, %v347
  %v383 = vpack.c.b16 %v350, %v349
  %v384 = vpack.c.b16 %v352, %v351
  %417 = vmatpush.bf16.msra.mxu0 %v360
  %418 = vmatpush.bf16.msra.mxu0 %v359
  %419 = vmatpush.bf16.msra.mxu0 %v358
  %420 = vmatpush.bf16.msra.mxu0 %v357
  %421 = vmatpush.bf16.msra.mxu0 %v356
  %422 = vmatpush.bf16.msra.mxu0 %v355
  %423 = vmatpush.bf16.msra.mxu0 %v354
  %424 = vmatpush.bf16.msra.mxu0 %v353
  %425 = vmatmul.bf16.gmra.mxu0 %v193
  %v426 = vpop.f32.mrf.mxu0
  %v427 = vadd.f32 %v108, %v426
  %v428 = vpop.f32.mrf.mxu0
  %v429 = vadd.f32 %v113, %v428
  %430 = vmatmul.bf16.gmra.mxu0 %v197
  %v431 = vpop.f32.mrf.mxu0
  %v432 = vadd.f32 %v118, %v431
  %v433 = vpop.f32.mrf.mxu0
  %v434 = vadd.f32 %v123, %v433
  %435 = vmatmul.bf16.gmra.mxu0 %v201
  %v436 = vpop.f32.mrf.mxu0
  %v437 = vadd.f32 %v128, %v436
  %v438 = vpop.f32.mrf.mxu0
  %v439 = vadd.f32 %v133, %v438
  %440 = vmatmul.bf16.gmra.mxu0 %v205
  %v441 = vpop.f32.mrf.mxu0
  %v442 = vadd.f32 %v138, %v441
  %v443 = vpop.f32.mrf.mxu0
  %v444 = vadd.f32 %v143, %v443
  %445 = vdwg.mxu0
  %446 = vmatpush.bf16.msra.mxu0 %v368
  %447 = vmatpush.bf16.msra.mxu0 %v367
  %448 = vmatpush.bf16.msra.mxu0 %v366
  %449 = vmatpush.bf16.msra.mxu0 %v365
  %450 = vmatpush.bf16.msra.mxu0 %v364
  %451 = vmatpush.bf16.msra.mxu0 %v363
  %452 = vmatpush.bf16.msra.mxu0 %v362
  %453 = vmatpush.bf16.msra.mxu0 %v361
  %454 = vmatmul.bf16.gmra.mxu0 %v194
  %v455 = vpop.f32.mrf.mxu0
  %v456 = vadd.f32 %v427, %v455
  %v457 = vpop.f32.mrf.mxu0
  %v458 = vadd.f32 %v429, %v457
  %459 = vmatmul.bf16.gmra.mxu0 %v198
  %v460 = vpop.f32.mrf.mxu0
  %v461 = vadd.f32 %v432, %v460
  %v462 = vpop.f32.mrf.mxu0
  %v463 = vadd.f32 %v434, %v462
  %464 = vmatmul.bf16.gmra.mxu0 %v202
  %v465 = vpop.f32.mrf.mxu0
  %v466 = vadd.f32 %v437, %v465
  %v467 = vpop.f32.mrf.mxu0
  %v468 = vadd.f32 %v439, %v467
  %469 = vmatmul.bf16.gmra.mxu0 %v206
  %v470 = vpop.f32.mrf.mxu0
  %v471 = vadd.f32 %v442, %v470
  %v472 = vpop.f32.mrf.mxu0
  %v473 = vadd.f32 %v444, %v472
  %474 = vdwg.mxu0
  %475 = vmatpush.bf16.msra.mxu0 %v376
  %476 = vmatpush.bf16.msra.mxu0 %v375
  %477 = vmatpush.bf16.msra.mxu0 %v374
  %478 = vmatpush.bf16.msra.mxu0 %v373
  %479 = vmatpush.bf16.msra.mxu0 %v372
  %480 = vmatpush.bf16.msra.mxu0 %v371
  %481 = vmatpush.bf16.msra.mxu0 %v370
  %482 = vmatpush.bf16.msra.mxu0 %v369
  %483 = vmatmul.bf16.gmra.mxu0 %v195
  %v484 = vpop.f32.mrf.mxu0
  %v485 = vadd.f32 %v456, %v484
  %v486 = vpop.f32.mrf.mxu0
  %v487 = vadd.f32 %v458, %v486
  %488 = vmatmul.bf16.gmra.mxu0 %v199
  %v489 = vpop.f32.mrf.mxu0
  %v490 = vadd.f32 %v461, %v489
  %v491 = vpop.f32.mrf.mxu0
  %v492 = vadd.f32 %v463, %v491
  %493 = vmatmul.bf16.gmra.mxu0 %v203
  %v494 = vpop.f32.mrf.mxu0
  %v495 = vadd.f32 %v466, %v494
  %v496 = vpop.f32.mrf.mxu0
  %v497 = vadd.f32 %v468, %v496
  %498 = vmatmul.bf16.gmra.mxu0 %v207
  %v499 = vpop.f32.mrf.mxu0
  %v500 = vadd.f32 %v471, %v499
  %v501 = vpop.f32.mrf.mxu0
  %v502 = vadd.f32 %v473, %v501
  %503 = vdwg.mxu0
  %504 = vmatpush.bf16.msra.mxu0 %v384
  %505 = vmatpush.bf16.msra.mxu0 %v383
  %506 = vmatpush.bf16.msra.mxu0 %v382
  %507 = vmatpush.bf16.msra.mxu0 %v381
  %508 = vmatpush.bf16.msra.mxu0 %v380
  %509 = vmatpush.bf16.msra.mxu0 %v379
  %510 = vmatpush.bf16.msra.mxu0 %v378
  %511 = vmatpush.bf16.msra.mxu0 %v377
  %512 = vmatmul.bf16.gmra.mxu0 %v196
  %v513 = vpop.f32.mrf.mxu0
  %v514 = vadd.f32 %v485, %v513
  %v515 = vpop.f32.mrf.mxu0
  %v516 = vadd.f32 %v487, %v515
  %517 = vmatmul.bf16.gmra.mxu0 %v200
  %v518 = vpop.f32.mrf.mxu0
  %v519 = vadd.f32 %v490, %v518
  %v520 = vpop.f32.mrf.mxu0
  %v521 = vadd.f32 %v492, %v520
  %522 = vmatmul.bf16.gmra.mxu0 %v204
  %v523 = vpop.f32.mrf.mxu0
  %v524 = vadd.f32 %v495, %v523
  %v525 = vpop.f32.mrf.mxu0
  %v526 = vadd.f32 %v497, %v525
  %527 = vmatmul.bf16.gmra.mxu0 %v208
  %v528 = vpop.f32.mrf.mxu0
  %v529 = vadd.f32 %v500, %v528
  %v530 = vpop.f32.mrf.mxu0
  %v531 = vadd.f32 %v502, %v530
  %532 = vdwg.mxu0
  %vm533 = vcmp.gt.f32.partialorder %v514, 0.0
  %vm534 = vcmp.gt.f32.partialorder %v516, 0.0
  %vm535 = vcmp.gt.f32.partialorder %v519, 0.0
  %vm536 = vcmp.gt.f32.partialorder %v521, 0.0
  %vm537 = vcmp.gt.f32.partialorder %v524, 0.0
  %vm538 = vcmp.gt.f32.partialorder %v526, 0.0
  %vm539 = vcmp.gt.f32.partialorder %v529, 0.0
  %vm540 = vcmp.gt.f32.partialorder %v531, 0.0
  %v541 = vmul.f32 %v514, 0.2
  %v542 = vmul.f32 %v516, 0.2
  %v543 = vmul.f32 %v519, 0.2
  %v544 = vmul.f32 %v521, 0.2
  %v545 = vmul.f32 %v524, 0.2
  %v546 = vmul.f32 %v526, 0.2
  %v547 = vmul.f32 %v529, 0.2
  %v548 = vmul.f32 %v531, 0.2
  %v549 = vsel %vm533, %v514, %v541
  %v550 = vsel %vm534, %v516, %v542
  %v551 = vsel %vm535, %v519, %v543
  %v552 = vsel %vm536, %v521, %v544
  %v553 = vsel %vm537, %v524, %v545
  %v554 = vsel %vm538, %v526, %v546
  %v555 = vsel %vm539, %v529, %v547
  %v556 = vsel %vm540, %v531, %v548
  %vm557 = vcmask 15360
  %558 = vst.msk [vmem:[%s3] sm:$0xff] %vm557, %v549
  %559 = vst.msk [vmem:[%s3 + $0x8] sm:$0xff] %vm557, %v550
  %560 = vst.msk [vmem:[%s3 + $0x10] sm:$0xff] %vm557, %v551
  %561 = vst.msk [vmem:[%s3 + $0x18] sm:$0xff] %vm557, %v552
  %562 = vst.msk [vmem:[%s3 + $0x20] sm:$0xff] %vm557, %v553
  %563 = vst.msk [vmem:[%s3 + $0x28] sm:$0xff] %vm557, %v554
  %564 = vst.msk [vmem:[%s3 + $0x30] sm:$0xff] %vm557, %v555
  %565 = vst.msk [vmem:[%s3 + $0x38] sm:$0xff] %vm557, %v556
  %v566 = vsel %vm557, %v549, 0.0
  %567 = vadd.xlane.f32.xlu0 %v566
  %v568 = vpop.xlane.xlu0 %567
  %v569 = vsel %vm557, %v550, 0.0
  %570 = vadd.xlane.f32.xlu0 %v569
  %v571 = vpop.xlane.xlu0 %570
  %v572 = vsel %vm557, %v551, 0.0
  %573 = vadd.xlane.f32.xlu0 %v572
  %v574 = vpop.xlane.xlu0 %573
  %v575 = vsel %vm557, %v552, 0.0
  %576 = vadd.xlane.f32.xlu0 %v575
  %v577 = vpop.xlane.xlu0 %576
  %v578 = vsel %vm557, %v553, 0.0
  %579 = vadd.xlane.f32.xlu0 %v578
  %v580 = vpop.xlane.xlu0 %579
  %v581 = vsel %vm557, %v554, 0.0
  %582 = vadd.xlane.f32.xlu0 %v581
  %v583 = vpop.xlane.xlu0 %582
  %v584 = vsel %vm557, %v555, 0.0
  %585 = vadd.xlane.f32.xlu0 %v584
  %v586 = vpop.xlane.xlu0 %585
  %v587 = vsel %vm557, %v556, 0.0
  %588 = vadd.xlane.f32.xlu0 %v587
  %v589 = vpop.xlane.xlu0 %588
  %vm590 = vcmask 7168
  %591 = vst.msk [vmem:[%s4] sm:$0xff] %vm590, %v568
  %592 = vst.msk [vmem:[%s4 + $0x8] sm:$0xff] %vm590, %v571
  %593 = vst.msk [vmem:[%s4 + $0x10] sm:$0xff] %vm590, %v574
  %594 = vst.msk [vmem:[%s4 + $0x18] sm:$0xff] %vm590, %v577
  %595 = vst.msk [vmem:[%s4 + $0x20] sm:$0xff] %vm590, %v580
  %596 = vst.msk [vmem:[%s4 + $0x28] sm:$0xff] %vm590, %v583
  %597 = vst.msk [vmem:[%s4 + $0x30] sm:$0xff] %vm590, %v586
  %598 = vst.msk [vmem:[%s4 + $0x38] sm:$0xff] %vm590, %v589
  %v599 = vmul.f32 %v549, %v549
  %v600 = vmul.f32 %v550, %v550
  %v601 = vmul.f32 %v551, %v551
  %v602 = vmul.f32 %v552, %v552
  %v603 = vmul.f32 %v553, %v553
  %v604 = vmul.f32 %v554, %v554
  %v605 = vmul.f32 %v555, %v555
  %v606 = vmul.f32 %v556, %v556
  %v607 = vsel %vm557, %v599, 0.0
  %608 = vadd.xlane.f32.xlu0 %v607
  %v609 = vpop.xlane.xlu0 %608
  %v610 = vsel %vm557, %v600, 0.0
  %611 = vadd.xlane.f32.xlu0 %v610
  %v612 = vpop.xlane.xlu0 %611
  %v613 = vsel %vm557, %v601, 0.0
  %614 = vadd.xlane.f32.xlu0 %v613
  %v615 = vpop.xlane.xlu0 %614
  %v616 = vsel %vm557, %v602, 0.0
  %617 = vadd.xlane.f32.xlu0 %v616
  %v618 = vpop.xlane.xlu0 %617
  %v619 = vsel %vm557, %v603, 0.0
  %620 = vadd.xlane.f32.xlu0 %v619
  %v621 = vpop.xlane.xlu0 %620
  %v622 = vsel %vm557, %v604, 0.0
  %623 = vadd.xlane.f32.xlu0 %v622
  %v624 = vpop.xlane.xlu0 %623
  %v625 = vsel %vm557, %v605, 0.0
  %626 = vadd.xlane.f32.xlu0 %v625
  %v627 = vpop.xlane.xlu0 %626
  %v628 = vsel %vm557, %v606, 0.0
  %629 = vadd.xlane.f32.xlu0 %v628
  %v630 = vpop.xlane.xlu0 %629
  %631 = vst.msk [vmem:[%s5] sm:$0xff] %vm590, %v609
  %632 = vst.msk [vmem:[%s5 + $0x8] sm:$0xff] %vm590, %v612
  %633 = vst.msk [vmem:[%s5 + $0x10] sm:$0xff] %vm590, %v615
  %634 = vst.msk [vmem:[%s5 + $0x18] sm:$0xff] %vm590, %v618
  %635 = vst.msk [vmem:[%s5 + $0x20] sm:$0xff] %vm590, %v621
  %636 = vst.msk [vmem:[%s5 + $0x28] sm:$0xff] %vm590, %v624
  %637 = vst.msk [vmem:[%s5 + $0x30] sm:$0xff] %vm590, %v627
  %638 = vst.msk [vmem:[%s5 + $0x38] sm:$0xff] %vm590, %v630
  // Predicated region
  $region14: #{encoder_forward.14} parent=0 // pred_check
    _
  $region15: #{encoder_forward.14} parent=0 // pred_check_branch
    %640 = sbr.rel (0) target = $region17
  $region16: #{encoder_forward.14} parent=0 // pred_region
    _
  $region17: #{encoder_forward.14} parent=0 // pred_fallthru
    _
  // Predicated region
  $region18: #{encoder_forward.14} parent=0 // pred_check
    _
  $region19: #{encoder_forward.14} parent=0 // pred_check_branch
    %642 = sbr.rel (0) target = $region21
  $region20: #{encoder_forward.14} parent=0 // pred_region
    _
  $region21: #{encoder_forward.14} parent=0 // pred_fallthru
    _
  // Predicated region
  $region22: #{encoder_forward.14} parent=0 // pred_check
    _
  $region23: #{encoder_forward.14} parent=0 // pred_check_branch
    %644 = sbr.rel (0) target = $region25
  $region24: #{encoder_forward.14} parent=0 // pred_region
    _
  $region25: #{encoder_forward.14} parent=0 // pred_fallthru
    _
  // Predicated region
  $region26: #{encoder_forward.14} parent=0 // pred_check
    _
  $region27: #{encoder_forward.14} parent=0 // pred_check_branch
    %646 = sbr.rel (0) target = $region29
  $region28: #{encoder_forward.14} parent=0 // pred_region
    _
  $region29: #{encoder_forward.14} parent=0 // pred_fallthru
    _
  // Predicated region
  $region30: #{encoder_forward.14} parent=0 // pred_check
    _
  $region31: #{encoder_forward.14} parent=0 // pred_check_branch
    %648 = sbr.rel (0) target = $region33
  $region32: #{encoder_forward.14} parent=0 // pred_region
    _
  $region33: #{encoder_forward.14} parent=0 // pred_fallthru
    _
  // Predicated region
  $region34: #{encoder_forward.14} parent=0 // pred_check
    _
  $region35: #{encoder_forward.14} parent=0 // pred_check_branch
    %650 = sbr.rel (0) target = $region37
  $region36: #{encoder_forward.14} parent=0 // pred_region
    _
  $region37: #{encoder_forward.14} parent=0 // pred_fallthru
    _

</llo_original>
